<compile_context>
chip_gen: v7x
topology: tpu7x:2x2x1
jax: 0.10.0
libtpu: 0.0.40
codegen_flags: <defaults>
</compile_context>

<pallas_src>
import functools

import jax
import jax.numpy as jnp
import numpy as np
from jax import lax
from jax.experimental import pallas as pl
from jax.experimental.pallas import tpu as pltpu


def _round_up(x, m):
    return (x + m - 1) // m * m


# ----------------------------- Pallas kernel ------------------------------- #
def _ae_kernel(x_ref, w0_ref, w_ref, b_ref, o_ref):
    # x_ref : (TM, F)        activation dtype (bf16 preferred)
    # w0_ref: (F, D)         bf16   -- layer-0 weight (native fan-in, BN folded)
    # w_ref : (L-1, D, D)    bf16   -- remaining layer weights (BN folded)
    # b_ref : (L, 1, D)      f32    -- folded biases
    # o_ref : (TM, D)        activation dtype
    x = x_ref[...].astype(jnp.bfloat16)

    # Layer 0: (TM, F) @ (F, D) -> f32 accumulate, bias + ReLU in f32.
    z = jnp.dot(x, w0_ref[...], preferred_element_type=jnp.float32) + b_ref[0]
    h = jnp.maximum(z, 0.0).astype(jnp.bfloat16)

    def body(l, h):
        z = jnp.dot(h, w_ref[l], preferred_element_type=jnp.float32) + b_ref[l + 1]
        return jnp.maximum(z, 0.0).astype(jnp.bfloat16)

    h = lax.fori_loop(0, w_ref.shape[0], body, h, unroll=True)
    o_ref[...] = h.astype(o_ref.dtype)


# --------------------------------- wrapper ---------------------------------- #
def autoencoder_forward(x, w0, w_rest, b_stack, feature_dim, *, tm=512):
    """x: (N, 1, T, F). w0: (F, D) bf16. w_rest: (L-1, D, D) bf16. b_stack: (L,1,D) f32."""
    N, C, T, F = x.shape
    Lm1, D, _ = w_rest.shape
    L = Lm1 + 1
    rows = N * C * T

    # Row tile: multiple of 16 for bf16 sublane packing (8 for f32); never larger
    # than the aligned row count (small inputs -> single grid step, no forced split).
    row_align = 16 if jnp.dtype(x.dtype).itemsize == 2 else 8
    tm = max(row_align,
             min(_round_up(tm, row_align), _round_up(rows, row_align)))
    grid = pl.cdiv(rows, tm)

    x_rows = x.reshape(rows, F)          # metadata-only reshape

    itm = jnp.dtype(x.dtype).itemsize
    flops = 2 * rows * (F * D + Lm1 * D * D)
    bytes_accessed = (rows * F * itm                     # activations in
                      + rows * D * itm                   # activations out
                      + w0.size * jnp.dtype(w0.dtype).itemsize
                      + w_rest.size * jnp.dtype(w_rest.dtype).itemsize
                      + b_stack.size * 4)

    out = pl.pallas_call(
        _ae_kernel,
        out_shape=jax.ShapeDtypeStruct((rows, D), x.dtype),
        grid_spec=pltpu.PrefetchScalarGridSpec(
            num_scalar_prefetch=0,
            grid=(grid,),
            in_specs=[
                pl.BlockSpec((tm, F), lambda i: (i, 0)),
                # Grid-invariant weight/bias blocks: stay resident in VMEM.
                pl.BlockSpec((F, D), lambda i: (0, 0)),
                pl.BlockSpec((Lm1, D, D), lambda i: (0, 0, 0)),
                pl.BlockSpec((L, 1, D), lambda i: (0, 0, 0)),
            ],
            out_specs=pl.BlockSpec((tm, D), lambda i: (i, 0)),
        ),
        compiler_params=pltpu.CompilerParams(
            dimension_semantics=("parallel",)),
        cost_estimate=pl.CostEstimate(flops=flops, transcendentals=0,
                                      bytes_accessed=bytes_accessed),
    )(x_rows, w0, w_rest, b_stack)

    # Kernel output is 128-lane dense; trim the feature padding in the consumer.
    y = out[:, :feature_dim]
    return y.reshape(N, C, T, feature_dim)


# ------------------------- parameter construction -------------------------- #
def build_params(key, feature_dim, enc_embed_dim, enc_num_layers,
                 dec_embed_dim, dec_num_layers):
    """Deterministically build per-layer (W, b) with eval-mode BN folded in."""
    enc_dim = [feature_dim] + [enc_embed_dim] * enc_num_layers
    dec_dim = [dec_embed_dim] * dec_num_layers + [feature_dim]
    in_out = list(zip(enc_dim[:-1], enc_dim[1:])) + \
             list(zip(dec_dim[:-1], dec_dim[1:]))

    eps = 1e-5
    Ws, bs = [], []
    for (fan_in, fan_out) in in_out:
        key, kw, kb, kg, kbt = jax.random.split(key, 5)
        bound = 1.0 / np.sqrt(fan_in)
        # Linear params, stored (in, out) == W_pt.T
        W = jax.random.uniform(kw, (fan_in, fan_out), jnp.float32, -bound, bound)
        b = jax.random.uniform(kb, (fan_out,), jnp.float32, -bound, bound)
        # BatchNorm2d(1) eval-mode params (scalar since C=1).
        gamma = jax.random.uniform(kg, (), jnp.float32, 0.5, 1.5)
        beta = 0.1 * jax.random.normal(kbt, (), jnp.float32)
        run_mean = jnp.float32(0.0)
        run_var = jnp.float32(1.0)
        scale = gamma / jnp.sqrt(run_var + eps)
        shift = beta - scale * run_mean
        Ws.append(W * scale)
        bs.append(b * scale + shift)
        # TODO(synk): Dropout omitted (eval-mode / inference semantics).
    return Ws, bs


def stack_and_pad(Ws, bs, D):
    """Layer 0 kept at native fan-in (F, D); layers 1.. padded/stacked to (L-1, D, D)."""
    F0, fo0 = Ws[0].shape
    w0 = jnp.zeros((F0, D), jnp.float32).at[:, :fo0].set(Ws[0])
    b_list = [jnp.zeros((D,), jnp.float32).at[:fo0].set(bs[0])]

    w_rest = []
    for W, b in zip(Ws[1:], bs[1:]):
        fi, fo = W.shape
        Wp = jnp.zeros((D, D), jnp.float32).at[:fi, :fo].set(W)
        bp = jnp.zeros((D,), jnp.float32).at[:fo].set(b)
        w_rest.append(Wp)
        b_list.append(bp)

    w0 = w0.astype(jnp.bfloat16)                        # MXU-native inputs
    w_rest = jnp.stack(w_rest).astype(jnp.bfloat16)     # (L-1, D, D) bf16
    b_stack = jnp.stack(b_list)[:, None, :]             # (L, 1, D) f32
    return w0, w_rest, b_stack


def reference_forward(x, w0, w_rest, b_stack, feature_dim):
    """Pure-JAX reference matching the kernel's bf16-carry / f32-acc numerics."""
    N, C, T, F = x.shape
    L = b_stack.shape[0]
    Ws = [w0] + [w_rest[i] for i in range(L - 1)]
    h = x.reshape(N * C * T, F)
    for l in range(L):
        Wl = Ws[l].astype(jnp.float32)
        hl = h.astype(jnp.bfloat16).astype(jnp.float32)
        z = hl @ Wl + b_stack[l, 0]
        h = jnp.maximum(z, 0.0).astype(jnp.bfloat16)
    y = h[:, :feature_dim].astype(x.dtype)
    return y.reshape(N, C, T, feature_dim)


# --------------------------------- main ------------------------------------ #
if __name__ == "__main__":
    # Small, module-consistent configuration (C must be 1 for BatchNorm2d(1)).
    feature_dim = 64
    enc_embed_dim = dec_embed_dim = 128
    enc_num_layers = dec_num_layers = 3
    D = 128  # common padded hidden width

    key = jax.random.PRNGKey(0)
    key, kx = jax.random.split(key)
    # bf16 produced at the producer (halves activation HBM traffic in the kernel).
    x = jax.random.normal(kx, (2, 1, 128, feature_dim), jnp.bfloat16)

    Ws, bs = build_params(key, feature_dim, enc_embed_dim, enc_num_layers,
                          dec_embed_dim, dec_num_layers)
    w0, w_rest, b_stack = stack_and_pad(Ws, bs, D)

    fwd = jax.jit(functools.partial(autoencoder_forward,
                                    feature_dim=feature_dim))
    y = jax.block_until_ready(fwd(x, w0, w_rest, b_stack))

    y_ref = reference_forward(x, w0, w_rest, b_stack, feature_dim)
    np.testing.assert_allclose(np.asarray(y, dtype=np.float32),
                               np.asarray(y_ref, dtype=np.float32),
                               rtol=5e-2, atol=5e-2)
    assert y.shape == x.shape and y.dtype == x.dtype
    print("KERNEL_OK")
</pallas_src>

<mosaic_0001>
module attributes {stable_mosaic.version = 11 : i64} {
  func.func @_ae_kernel(%arg0: i32, %arg1: memref<256x64xbf16, #tpu.memory_space<vmem>>, %arg2: memref<64x128xbf16, #tpu.memory_space<vmem>>, %arg3: memref<5x128x128xbf16, #tpu.memory_space<vmem>>, %arg4: memref<6x1x128xf32, #tpu.memory_space<vmem>>, %arg5: memref<256x128xbf16, #tpu.memory_space<vmem>>) attributes {dimension_semantics = [#tpu.dimension_semantics<parallel>], iteration_bounds = array<i64: 1>, scalar_prefetch = 0 : i64, scratch_operands = 0 : i64, tpu.core_type = #tpu.core_type<tc>, window_params = [{transform_indices = @transform_0, window_bounds = array<i64: 256, 64>}, {pipeline_mode = #tpu.pipeline_mode<synchronous>, transform_indices = @transform_1, window_bounds = array<i64: 64, 128>}, {pipeline_mode = #tpu.pipeline_mode<synchronous>, transform_indices = @transform_2, window_bounds = array<i64: 5, 128, 128>}, {pipeline_mode = #tpu.pipeline_mode<synchronous>, transform_indices = @transform_3, window_bounds = array<i64: 6, 1, 128>}, {transform_indices = @transform_4, window_bounds = array<i64: 256, 128>}]} {
    %c0 = arith.constant 0 : index
    %c0_0 = arith.constant 0 : index
    %0 = vector.load %arg1[%c0, %c0_0] : memref<256x64xbf16, #tpu.memory_space<vmem>>, vector<256x64xbf16>
    %c0_1 = arith.constant 0 : index
    %c0_2 = arith.constant 0 : index
    %1 = vector.load %arg2[%c0_1, %c0_2] : memref<64x128xbf16, #tpu.memory_space<vmem>>, vector<64x128xbf16>
    %cst = arith.constant dense<0.000000e+00> : vector<256x128xf32>
    %2 = tpu.matmul %0, %1, %cst {dimension_numbers = #tpu.dot_dimension_numbers<[1], [0], [0], [1], [0, 0, 1, 1], [], []>} : vector<256x64xbf16>, vector<64x128xbf16>, vector<256x128xf32> -> vector<256x128xf32>
    %c0_3 = arith.constant 0 : index
    %c0_4 = arith.constant 0 : index
    %c0_5 = arith.constant 0 : index
    %3 = vector.load %arg4[%c0_3, %c0_4, %c0_5] : memref<6x1x128xf32, #tpu.memory_space<vmem>>, vector<1x1x128xf32>
    %4 = vector.shape_cast %3 : vector<1x1x128xf32> to vector<1x128xf32>
    %5 = vector.broadcast %4 : vector<1x128xf32> to vector<256x128xf32>
    %6 = arith.addf %2, %5 : vector<256x128xf32>
    %cst_6 = arith.constant 0.000000e+00 : f32
    %7 = vector.broadcast %cst_6 : f32 to vector<256x128xf32>
    %8 = arith.maximumf %6, %7 : vector<256x128xf32>
    %9 = arith.truncf %8 : vector<256x128xf32> to vector<256x128xbf16>
    %c0_i32 = arith.constant 0 : i32
    %10 = arith.index_cast %c0_i32 : i32 to index
    %c0_7 = arith.constant 0 : index
    %c0_8 = arith.constant 0 : index
    %11 = vector.load %arg3[%10, %c0_7, %c0_8] : memref<5x128x128xbf16, #tpu.memory_space<vmem>>, vector<1x128x128xbf16>
    %12 = vector.shape_cast %11 : vector<1x128x128xbf16> to vector<128x128xbf16>
    %cst_9 = arith.constant dense<0.000000e+00> : vector<256x128xf32>
    %13 = tpu.matmul %9, %12, %cst_9 {dimension_numbers = #tpu.dot_dimension_numbers<[1], [0], [0], [1], [0, 0, 1, 1], [], []>} : vector<256x128xbf16>, vector<128x128xbf16>, vector<256x128xf32> -> vector<256x128xf32>
    %c1_i32 = arith.constant 1 : i32
    %14 = arith.addi %c0_i32, %c1_i32 : i32
    %15 = arith.index_cast %14 : i32 to index
    %c0_10 = arith.constant 0 : index
    %c0_11 = arith.constant 0 : index
    %16 = vector.load %arg4[%15, %c0_10, %c0_11] : memref<6x1x128xf32, #tpu.memory_space<vmem>>, vector<1x1x128xf32>
    %17 = vector.shape_cast %16 : vector<1x1x128xf32> to vector<1x128xf32>
    %18 = vector.broadcast %17 : vector<1x128xf32> to vector<256x128xf32>
    %19 = arith.addf %13, %18 : vector<256x128xf32>
    %cst_12 = arith.constant 0.000000e+00 : f32
    %20 = vector.broadcast %cst_12 : f32 to vector<256x128xf32>
    %21 = arith.maximumf %19, %20 : vector<256x128xf32>
    %22 = arith.truncf %21 : vector<256x128xf32> to vector<256x128xbf16>
    %c1_i32_13 = arith.constant 1 : i32
    %23 = arith.index_cast %c1_i32_13 : i32 to index
    %c0_14 = arith.constant 0 : index
    %c0_15 = arith.constant 0 : index
    %24 = vector.load %arg3[%23, %c0_14, %c0_15] : memref<5x128x128xbf16, #tpu.memory_space<vmem>>, vector<1x128x128xbf16>
    %25 = vector.shape_cast %24 : vector<1x128x128xbf16> to vector<128x128xbf16>
    %cst_16 = arith.constant dense<0.000000e+00> : vector<256x128xf32>
    %26 = tpu.matmul %22, %25, %cst_16 {dimension_numbers = #tpu.dot_dimension_numbers<[1], [0], [0], [1], [0, 0, 1, 1], [], []>} : vector<256x128xbf16>, vector<128x128xbf16>, vector<256x128xf32> -> vector<256x128xf32>
    %c1_i32_17 = arith.constant 1 : i32
    %27 = arith.addi %c1_i32_13, %c1_i32_17 : i32
    %28 = arith.index_cast %27 : i32 to index
    %c0_18 = arith.constant 0 : index
    %c0_19 = arith.constant 0 : index
    %29 = vector.load %arg4[%28, %c0_18, %c0_19] : memref<6x1x128xf32, #tpu.memory_space<vmem>>, vector<1x1x128xf32>
    %30 = vector.shape_cast %29 : vector<1x1x128xf32> to vector<1x128xf32>
    %31 = vector.broadcast %30 : vector<1x128xf32> to vector<256x128xf32>
    %32 = arith.addf %26, %31 : vector<256x128xf32>
    %cst_20 = arith.constant 0.000000e+00 : f32
    %33 = vector.broadcast %cst_20 : f32 to vector<256x128xf32>
    %34 = arith.maximumf %32, %33 : vector<256x128xf32>
    %35 = arith.truncf %34 : vector<256x128xf32> to vector<256x128xbf16>
    %c2_i32 = arith.constant 2 : i32
    %36 = arith.index_cast %c2_i32 : i32 to index
    %c0_21 = arith.constant 0 : index
    %c0_22 = arith.constant 0 : index
    %37 = vector.load %arg3[%36, %c0_21, %c0_22] : memref<5x128x128xbf16, #tpu.memory_space<vmem>>, vector<1x128x128xbf16>
    %38 = vector.shape_cast %37 : vector<1x128x128xbf16> to vector<128x128xbf16>
    %cst_23 = arith.constant dense<0.000000e+00> : vector<256x128xf32>
    %39 = tpu.matmul %35, %38, %cst_23 {dimension_numbers = #tpu.dot_dimension_numbers<[1], [0], [0], [1], [0, 0, 1, 1], [], []>} : vector<256x128xbf16>, vector<128x128xbf16>, vector<256x128xf32> -> vector<256x128xf32>
    %c1_i32_24 = arith.constant 1 : i32
    %40 = arith.addi %c2_i32, %c1_i32_24 : i32
    %41 = arith.index_cast %40 : i32 to index
    %c0_25 = arith.constant 0 : index
    %c0_26 = arith.constant 0 : index
    %42 = vector.load %arg4[%41, %c0_25, %c0_26] : memref<6x1x128xf32, #tpu.memory_space<vmem>>, vector<1x1x128xf32>
    %43 = vector.shape_cast %42 : vector<1x1x128xf32> to vector<1x128xf32>
    %44 = vector.broadcast %43 : vector<1x128xf32> to vector<256x128xf32>
    %45 = arith.addf %39, %44 : vector<256x128xf32>
    %cst_27 = arith.constant 0.000000e+00 : f32
    %46 = vector.broadcast %cst_27 : f32 to vector<256x128xf32>
    %47 = arith.maximumf %45, %46 : vector<256x128xf32>
    %48 = arith.truncf %47 : vector<256x128xf32> to vector<256x128xbf16>
    %c3_i32 = arith.constant 3 : i32
    %49 = arith.index_cast %c3_i32 : i32 to index
    %c0_28 = arith.constant 0 : index
    %c0_29 = arith.constant 0 : index
    %50 = vector.load %arg3[%49, %c0_28, %c0_29] : memref<5x128x128xbf16, #tpu.memory_space<vmem>>, vector<1x128x128xbf16>
    %51 = vector.shape_cast %50 : vector<1x128x128xbf16> to vector<128x128xbf16>
    %cst_30 = arith.constant dense<0.000000e+00> : vector<256x128xf32>
    %52 = tpu.matmul %48, %51, %cst_30 {dimension_numbers = #tpu.dot_dimension_numbers<[1], [0], [0], [1], [0, 0, 1, 1], [], []>} : vector<256x128xbf16>, vector<128x128xbf16>, vector<256x128xf32> -> vector<256x128xf32>
    %c1_i32_31 = arith.constant 1 : i32
    %53 = arith.addi %c3_i32, %c1_i32_31 : i32
    %54 = arith.index_cast %53 : i32 to index
    %c0_32 = arith.constant 0 : index
    %c0_33 = arith.constant 0 : index
    %55 = vector.load %arg4[%54, %c0_32, %c0_33] : memref<6x1x128xf32, #tpu.memory_space<vmem>>, vector<1x1x128xf32>
    %56 = vector.shape_cast %55 : vector<1x1x128xf32> to vector<1x128xf32>
    %57 = vector.broadcast %56 : vector<1x128xf32> to vector<256x128xf32>
    %58 = arith.addf %52, %57 : vector<256x128xf32>
    %cst_34 = arith.constant 0.000000e+00 : f32
    %59 = vector.broadcast %cst_34 : f32 to vector<256x128xf32>
    %60 = arith.maximumf %58, %59 : vector<256x128xf32>
    %61 = arith.truncf %60 : vector<256x128xf32> to vector<256x128xbf16>
    %c4_i32 = arith.constant 4 : i32
    %62 = arith.index_cast %c4_i32 : i32 to index
    %c0_35 = arith.constant 0 : index
    %c0_36 = arith.constant 0 : index
    %63 = vector.load %arg3[%62, %c0_35, %c0_36] : memref<5x128x128xbf16, #tpu.memory_space<vmem>>, vector<1x128x128xbf16>
    %64 = vector.shape_cast %63 : vector<1x128x128xbf16> to vector<128x128xbf16>
    %cst_37 = arith.constant dense<0.000000e+00> : vector<256x128xf32>
    %65 = tpu.matmul %61, %64, %cst_37 {dimension_numbers = #tpu.dot_dimension_numbers<[1], [0], [0], [1], [0, 0, 1, 1], [], []>} : vector<256x128xbf16>, vector<128x128xbf16>, vector<256x128xf32> -> vector<256x128xf32>
    %c1_i32_38 = arith.constant 1 : i32
    %66 = arith.addi %c4_i32, %c1_i32_38 : i32
    %67 = arith.index_cast %66 : i32 to index
    %c0_39 = arith.constant 0 : index
    %c0_40 = arith.constant 0 : index
    %68 = vector.load %arg4[%67, %c0_39, %c0_40] : memref<6x1x128xf32, #tpu.memory_space<vmem>>, vector<1x1x128xf32>
    %69 = vector.shape_cast %68 : vector<1x1x128xf32> to vector<1x128xf32>
    %70 = vector.broadcast %69 : vector<1x128xf32> to vector<256x128xf32>
    %71 = arith.addf %65, %70 : vector<256x128xf32>
    %cst_41 = arith.constant 0.000000e+00 : f32
    %72 = vector.broadcast %cst_41 : f32 to vector<256x128xf32>
    %73 = arith.maximumf %71, %72 : vector<256x128xf32>
    %74 = arith.truncf %73 : vector<256x128xf32> to vector<256x128xbf16>
    %c5_i32 = arith.constant 5 : i32
    %c0_42 = arith.constant 0 : index
    %c0_43 = arith.constant 0 : index
    %75 = vector.load %arg5[%c0_42, %c0_43] : memref<256x128xbf16, #tpu.memory_space<vmem>>, vector<256x128xbf16>
    tpu.vector_store %arg5[%c0_42, %c0_43], %74 {strides = array<i32>} : memref<256x128xbf16, #tpu.memory_space<vmem>>, vector<256x128xbf16>,
    return
  }
  func.func @transform_0(%arg0: i32) -> (i32, i32) {
    %c0_i32 = arith.constant 0 : i32
    %c0_i32_0 = arith.constant 0 : i32
    return %arg0, %c0_i32 : i32, i32
  }
  func.func @transform_1(%arg0: i32) -> (i32, i32) {
    %c0_i32 = arith.constant 0 : i32
    %c0_i32_0 = arith.constant 0 : i32
    %c0_i32_1 = arith.constant 0 : i32
    return %c0_i32, %c0_i32_0 : i32, i32
  }
  func.func @transform_2(%arg0: i32) -> (i32, i32, i32) {
    %c0_i32 = arith.constant 0 : i32
    %c0_i32_0 = arith.constant 0 : i32
    %c0_i32_1 = arith.constant 0 : i32
    %c0_i32_2 = arith.constant 0 : i32
    return %c0_i32, %c0_i32_0, %c0_i32_1 : i32, i32, i32
  }
  func.func @transform_3(%arg0: i32) -> (i32, i32, i32) {
    %c0_i32 = arith.constant 0 : i32
    %c0_i32_0 = arith.constant 0 : i32
    %c0_i32_1 = arith.constant 0 : i32
    %c0_i32_2 = arith.constant 0 : i32
    return %c0_i32, %c0_i32_0, %c0_i32_1 : i32, i32, i32
  }
  func.func @transform_4(%arg0: i32) -> (i32, i32) {
    %c0_i32 = arith.constant 0 : i32
    %c0_i32_0 = arith.constant 0 : i32
    return %arg0, %c0_i32 : i32, i32
  }
}

</mosaic_0001>

<llo_original>
// kernel: autoencoder_forward.1
$region0: #{autoencoder_forward.1}
  #allocation0 [shape = 'u32[]', space=smem, size = 0x4, offset = 0x4, fixed_abs, tag = 'smem constant byte address 0x4 - core index']
  #allocation1 [shape = 'u32[144,128]{1,0:T(1,128)}', space=vmem, size = 0x12000, scoped, tag = 'internal scratch']
  %s0 = inlined_call_operand.vmem [shape: bf16[256,64], index: 0, kind: input, shape index: {}]
  %s1 = inlined_call_operand.vmem [shape: bf16[64,128], index: 1, kind: input, shape index: {}]
  %s2 = inlined_call_operand.hbm [shape: bf16[5,128,128], index: 2, kind: input, shape index: {}]
  %s3 = inlined_call_operand.vmem [shape: f32[6,1,128], index: 3, kind: input, shape index: {}]
  %s4 = inlined_call_operand.vmem [shape: bf16[256,128], index: 4, kind: output, shape index: {}]
  %s5 = sld [smem:[#allocation0]]
  $region30: #{autoencoder_forward.1} parent=0
    _
  %s7 = ssub.s32 1, %s5
  %s8 = scalar_select 0, %s7, %s5
  $region1: #{autoencoder_forward.1} parent=0
    #allocation2 [shape = 'u8[163840]{0}', space=vmem, size = 0x28000, scoped, tag = 'input window, operand 2, single buffered']
    #allocation3 [shape = 's32[1]{0}', space=sflag, size = 0x4, scoped, tag = 'scoped memory for autoencoder_forward.1']
    %9 = vsyncpa [#allocation3], 0
    // Predicated region
    $region2: #{autoencoder_forward.1} parent=1 // pred_check
      _
    $region3: #{autoencoder_forward.1} parent=1 // pred_check_branch
      %11 = sbr.rel (0) target = $region5
    $region4: #{autoencoder_forward.1} parent=1 // pred_region
      _
    $region5: #{autoencoder_forward.1} parent=1 // pred_fallthru
      _
    // Predicated region
    $region6: #{autoencoder_forward.1} parent=1 // pred_check
      _
    $region7: #{autoencoder_forward.1} parent=1 // pred_check_branch
      %13 = sbr.rel (0) target = $region9
    $region8: #{autoencoder_forward.1} parent=1 // pred_region
      _
    $region9: #{autoencoder_forward.1} parent=1 // pred_fallthru
      _
    // Predicated region
    $region10: #{autoencoder_forward.1} parent=1 // pred_check
      _
    $region11: #{autoencoder_forward.1} parent=1 // pred_check_branch
      %15 = sbr.rel (0) target = $region13
    $region12: #{autoencoder_forward.1} parent=1 // pred_region
      %s17 = ssub.s32 5120, 5120
      %18 = vsyncadd [#allocation3], %s17
      %s19 = sshll.u32 [#allocation2], 4
      %s20 = int_to_ptr.vmem [resolvable:$true] %s19
      %25 = dma.hbm_to_vmem [thread:$0]  %s2, 5120, %s20, [#allocation3], 64, 64, 4
    $region13: #{autoencoder_forward.1} parent=1 // pred_fallthru
      _
    // Predicated region
    $region14: #{autoencoder_forward.1} parent=1 // pred_check
      _
    $region15: #{autoencoder_forward.1} parent=1 // pred_check_branch
      %27 = sbr.rel (0) target = $region17
    $region16: #{autoencoder_forward.1} parent=1 // pred_region
      _
    $region17: #{autoencoder_forward.1} parent=1 // pred_fallthru
      _
    // Predicated region
    $region18: #{autoencoder_forward.1} parent=1 // pred_check
      _
    $region19: #{autoencoder_forward.1} parent=1 // pred_check_branch
      %29 = sbr.rel (0) target = $region21
    $region20: #{autoencoder_forward.1} parent=1 // pred_region
      %30 = dma.done [#allocation3], 5120
    $region21: #{autoencoder_forward.1} parent=1 // pred_fallthru
      _
    %v32 = vld [vmem:[%s0] sm:$0xf]
    %v33 = vld [vmem:[%s0 + $0x4] sm:$0xf]
    %v34 = vld [vmem:[%s0 + $0x8] sm:$0xf]
    %v35 = vld [vmem:[%s0 + $0xc] sm:$0xf]
    %v36 = vld [vmem:[%s0 + $0x10] sm:$0xf]
    %v37 = vld [vmem:[%s0 + $0x14] sm:$0xf]
    %v38 = vld [vmem:[%s0 + $0x18] sm:$0xf]
    %v39 = vld [vmem:[%s0 + $0x1c] sm:$0xf]
    %v40 = vld [vmem:[%s0 + $0x20] sm:$0xf]
    %v41 = vld [vmem:[%s0 + $0x24] sm:$0xf]
    %v42 = vld [vmem:[%s0 + $0x28] sm:$0xf]
    %v43 = vld [vmem:[%s0 + $0x2c] sm:$0xf]
    %v44 = vld [vmem:[%s0 + $0x30] sm:$0xf]
    %v45 = vld [vmem:[%s0 + $0x34] sm:$0xf]
    %v46 = vld [vmem:[%s0 + $0x38] sm:$0xf]
    %v47 = vld [vmem:[%s0 + $0x3c] sm:$0xf]
    %v48 = vld [vmem:[%s0 + $0x40] sm:$0xf]
    %v49 = vld [vmem:[%s0 + $0x44] sm:$0xf]
    %v50 = vld [vmem:[%s0 + $0x48] sm:$0xf]
    %v51 = vld [vmem:[%s0 + $0x4c] sm:$0xf]
    %v52 = vld [vmem:[%s0 + $0x50] sm:$0xf]
    %v53 = vld [vmem:[%s0 + $0x54] sm:$0xf]
    %v54 = vld [vmem:[%s0 + $0x58] sm:$0xf]
    %v55 = vld [vmem:[%s0 + $0x5c] sm:$0xf]
    %v56 = vld [vmem:[%s0 + $0x60] sm:$0xf]
    %v57 = vld [vmem:[%s0 + $0x64] sm:$0xf]
    %v58 = vld [vmem:[%s0 + $0x68] sm:$0xf]
    %v59 = vld [vmem:[%s0 + $0x6c] sm:$0xf]
    %v60 = vld [vmem:[%s0 + $0x70] sm:$0xf]
    %v61 = vld [vmem:[%s0 + $0x74] sm:$0xf]
    %v62 = vld [vmem:[%s0 + $0x78] sm:$0xf]
    %v63 = vld [vmem:[%s0 + $0x7c] sm:$0xf]
    %v64 = vld [vmem:[%s1] sm:$0xf]
    %v65 = vld [vmem:[%s1 + $0x4] sm:$0xf]
    %v66 = vld [vmem:[%s1 + $0x8] sm:$0xf]
    %v67 = vld [vmem:[%s1 + $0xc] sm:$0xf]
    %v68 = vld [vmem:[%s1 + $0x10] sm:$0xf]
    %v69 = vld [vmem:[%s1 + $0x14] sm:$0xf]
    %v70 = vld [vmem:[%s1 + $0x18] sm:$0xf]
    %v71 = vld [vmem:[%s1 + $0x1c] sm:$0xf]
    %v72 = vld [vmem:[%s3] sm:$0x1]
    %v74 = vlaneseq
    %v75 = vshrl.u32 %v74, 7
    %v76 = vsub.s32 0, %v75
    %v77 = vrot.slane %v72, %v76
    %v111 = vunpack.c.l.b16 %v32
    %v112 = vunpack.c.l.b16 %v33
    %v113 = vunpack.c.l.b16 %v34
    %v114 = vunpack.c.l.b16 %v35
    %v115 = vunpack.c.l.b16 %v36
    %v116 = vunpack.c.l.b16 %v37
    %v117 = vunpack.c.l.b16 %v38
    %v118 = vunpack.c.l.b16 %v39
    %v119 = vunpack.c.l.b16 %v40
    %v120 = vunpack.c.l.b16 %v41
    %v121 = vunpack.c.l.b16 %v42
    %v122 = vunpack.c.l.b16 %v43
    %v123 = vunpack.c.l.b16 %v44
    %v124 = vunpack.c.l.b16 %v45
    %v125 = vunpack.c.l.b16 %v46
    %v126 = vunpack.c.l.b16 %v47
    %v127 = vunpack.c.l.b16 %v48
    %v128 = vunpack.c.l.b16 %v49
    %v129 = vunpack.c.l.b16 %v50
    %v130 = vunpack.c.l.b16 %v51
    %v131 = vunpack.c.l.b16 %v52
    %v132 = vunpack.c.l.b16 %v53
    %v133 = vunpack.c.l.b16 %v54
    %v134 = vunpack.c.l.b16 %v55
    %v135 = vunpack.c.l.b16 %v56
    %v136 = vunpack.c.l.b16 %v57
    %v137 = vunpack.c.l.b16 %v58
    %v138 = vunpack.c.l.b16 %v59
    %v139 = vunpack.c.l.b16 %v60
    %v140 = vunpack.c.l.b16 %v61
    %v141 = vunpack.c.l.b16 %v62
    %v142 = vunpack.c.l.b16 %v63
    %v143 = vpack.c.b16 %v112, %v111
    %v144 = vpack.c.b16 %v114, %v113
    %v145 = vpack.c.b16 %v116, %v115
    %v146 = vpack.c.b16 %v118, %v117
    %v147 = vpack.c.b16 %v120, %v119
    %v148 = vpack.c.b16 %v122, %v121
    %v149 = vpack.c.b16 %v124, %v123
    %v150 = vpack.c.b16 %v126, %v125
    %v151 = vpack.c.b16 %v128, %v127
    %v152 = vpack.c.b16 %v130, %v129
    %v153 = vpack.c.b16 %v132, %v131
    %v154 = vpack.c.b16 %v134, %v133
    %v155 = vpack.c.b16 %v136, %v135
    %v156 = vpack.c.b16 %v138, %v137
    %v157 = vpack.c.b16 %v140, %v139
    %v158 = vpack.c.b16 %v142, %v141
    %v167 = vunpack.c.l.b16 %v64
    %v168 = vunpack.c.l.b16 %v65
    %v169 = vunpack.c.l.b16 %v66
    %v170 = vunpack.c.l.b16 %v67
    %v171 = vunpack.c.l.b16 %v68
    %v172 = vunpack.c.l.b16 %v69
    %v173 = vunpack.c.l.b16 %v70
    %v174 = vunpack.c.l.b16 %v71
    %v175 = vpack.c.b16 %v168, %v167
    %v176 = vpack.c.b16 %v170, %v169
    %v177 = vpack.c.b16 %v172, %v171
    %v178 = vpack.c.b16 %v174, %v173
    %vm183 = vcmask 523264
    %v185 = vsel %vm183, %v143, 0
    %v188 = vsel %vm183, %v144, 0
    %v191 = vsel %vm183, %v145, 0
    %v194 = vsel %vm183, %v146, 0
    %v197 = vsel %vm183, %v147, 0
    %v200 = vsel %vm183, %v148, 0
    %v203 = vsel %vm183, %v149, 0
    %v206 = vsel %vm183, %v150, 0
    %v209 = vsel %vm183, %v151, 0
    %v212 = vsel %vm183, %v152, 0
    %v215 = vsel %vm183, %v153, 0
    %v218 = vsel %vm183, %v154, 0
    %v221 = vsel %vm183, %v155, 0
    %v224 = vsel %vm183, %v156, 0
    %v227 = vsel %vm183, %v157, 0
    %v230 = vsel %vm183, %v158, 0
    %232 = vmatprep.subr.bf16.mxu0 0
    %233 = vmatpush1.bf16.msra.mxu0 %v175
    %234 = vmatprep.subr.bf16.mxu0 0
    %235 = vmatpush1.bf16.msra.mxu0 %v176
    %236 = vmatprep.subr.bf16.mxu0 0
    %237 = vmatpush1.bf16.msra.mxu0 %v177
    %238 = vmatprep.subr.bf16.mxu0 0
    %239 = vmatpush1.bf16.msra.mxu0 %v178
    %240 = vmatprep.subr.bf16.mxu0 0
    %241 = vmatpush1.bf16.msra.mxu0 0
    %242 = vmatprep.subr.bf16.mxu0 0
    %243 = vmatpush1.bf16.msra.mxu0 0
    %244 = vmatprep.subr.bf16.mxu0 0
    %245 = vmatpush1.bf16.msra.mxu0 0
    %246 = vmatprep.subr.bf16.mxu0 0
    %247 = vmatpush1.bf16.msra.mxu0 0
    %248 = vmatprep.subr.bf16.mxu0 0
    %249 = vmatpush1.bf16.msra.mxu0 0
    %250 = vmatprep.subr.bf16.mxu0 0
    %251 = vmatpush1.bf16.msra.mxu0 0
    %252 = vmatprep.subr.bf16.mxu0 0
    %253 = vmatpush1.bf16.msra.mxu0 0
    %254 = vmatprep.subr.bf16.mxu0 0
    %255 = vmatpush1.bf16.msra.mxu0 0
    %256 = vmatprep.subr.bf16.mxu0 0
    %257 = vmatpush1.bf16.msra.mxu0 0
    %258 = vmatprep.subr.bf16.mxu0 0
    %259 = vmatpush1.bf16.msra.mxu0 0
    %260 = vmatprep.subr.bf16.mxu0 0
    %261 = vmatpush1.bf16.msra.mxu0 0
    %262 = vmatprep.subr.bf16.mxu0 0
    %263 = vmatpush1.bf16.msra.mxu0 0
    %264 = vmatprep.mubr.bf16.mxu0 0
    %265 = vmatmul.mubr.bf16.gmra.mrb[0].mxu0 %v185
    %v266 = vpop.f32.mrb[0].mxu0
    %v267 = vadd.f32 %v77, %v266
    %v268 = vpop.f32.mrb[0].mxu0
    %v269 = vpop.f32.mrb[0].mxu0
    %v270 = vadd.f32 %v77, %v269
    %v271 = vpop.f32.mrb[0].mxu0
    %272 = vmatprep.mubr.bf16.mxu0 0
    %273 = vmatmul.mubr.bf16.gmra.mrb[0].mxu0 %v188
    %v274 = vpop.f32.mrb[0].mxu0
    %v275 = vadd.f32 %v77, %v274
    %v276 = vpop.f32.mrb[0].mxu0
    %v277 = vpop.f32.mrb[0].mxu0
    %v278 = vadd.f32 %v77, %v277
    %v279 = vpop.f32.mrb[0].mxu0
    %280 = vmatprep.mubr.bf16.mxu0 0
    %281 = vmatmul.mubr.bf16.gmra.mrb[0].mxu0 %v191
    %v282 = vpop.f32.mrb[0].mxu0
    %v283 = vadd.f32 %v77, %v282
    %v284 = vpop.f32.mrb[0].mxu0
    %v285 = vpop.f32.mrb[0].mxu0
    %v286 = vadd.f32 %v77, %v285
    %v287 = vpop.f32.mrb[0].mxu0
    %288 = vmatprep.mubr.bf16.mxu0 0
    %289 = vmatmul.mubr.bf16.gmra.mrb[0].mxu0 %v194
    %v290 = vpop.f32.mrb[0].mxu0
    %v291 = vadd.f32 %v77, %v290
    %v292 = vpop.f32.mrb[0].mxu0
    %v293 = vpop.f32.mrb[0].mxu0
    %v294 = vadd.f32 %v77, %v293
    %v295 = vpop.f32.mrb[0].mxu0
    %296 = vmatprep.mubr.bf16.mxu0 0
    %297 = vmatmul.mubr.bf16.gmra.mrb[0].mxu0 %v197
    %v298 = vpop.f32.mrb[0].mxu0
    %v299 = vadd.f32 %v77, %v298
    %v300 = vpop.f32.mrb[0].mxu0
    %v301 = vpop.f32.mrb[0].mxu0
    %v302 = vadd.f32 %v77, %v301
    %v303 = vpop.f32.mrb[0].mxu0
    %304 = vmatprep.mubr.bf16.mxu0 0
    %305 = vmatmul.mubr.bf16.gmra.mrb[0].mxu0 %v200
    %v306 = vpop.f32.mrb[0].mxu0
    %v307 = vadd.f32 %v77, %v306
    %v308 = vpop.f32.mrb[0].mxu0
    %v309 = vpop.f32.mrb[0].mxu0
    %v310 = vadd.f32 %v77, %v309
    %v311 = vpop.f32.mrb[0].mxu0
    %312 = vmatprep.mubr.bf16.mxu0 0
    %313 = vmatmul.mubr.bf16.gmra.mrb[0].mxu0 %v203
    %v314 = vpop.f32.mrb[0].mxu0
    %v315 = vadd.f32 %v77, %v314
    %v316 = vpop.f32.mrb[0].mxu0
    %v317 = vpop.f32.mrb[0].mxu0
    %v318 = vadd.f32 %v77, %v317
    %v319 = vpop.f32.mrb[0].mxu0
    %320 = vmatprep.mubr.bf16.mxu0 0
    %321 = vmatmul.mubr.bf16.gmra.mrb[0].mxu0 %v206
    %v322 = vpop.f32.mrb[0].mxu0
    %v323 = vadd.f32 %v77, %v322
    %v324 = vpop.f32.mrb[0].mxu0
    %v325 = vpop.f32.mrb[0].mxu0
    %v326 = vadd.f32 %v77, %v325
    %v327 = vpop.f32.mrb[0].mxu0
    %328 = vmatprep.mubr.bf16.mxu0 0
    %329 = vmatmul.mubr.bf16.gmra.mrb[0].mxu0 %v209
    %v330 = vpop.f32.mrb[0].mxu0
    %v331 = vadd.f32 %v77, %v330
    %v332 = vpop.f32.mrb[0].mxu0
    %v333 = vpop.f32.mrb[0].mxu0
    %v334 = vadd.f32 %v77, %v333
    %v335 = vpop.f32.mrb[0].mxu0
    %336 = vmatprep.mubr.bf16.mxu0 0
    %337 = vmatmul.mubr.bf16.gmra.mrb[0].mxu0 %v212
    %v338 = vpop.f32.mrb[0].mxu0
    %v339 = vadd.f32 %v77, %v338
    %v340 = vpop.f32.mrb[0].mxu0
    %v341 = vpop.f32.mrb[0].mxu0
    %v342 = vadd.f32 %v77, %v341
    %v343 = vpop.f32.mrb[0].mxu0
    %344 = vmatprep.mubr.bf16.mxu0 0
    %345 = vmatmul.mubr.bf16.gmra.mrb[0].mxu0 %v215
    %v346 = vpop.f32.mrb[0].mxu0
    %v347 = vadd.f32 %v77, %v346
    %v348 = vpop.f32.mrb[0].mxu0
    %v349 = vpop.f32.mrb[0].mxu0
    %v350 = vadd.f32 %v77, %v349
    %v351 = vpop.f32.mrb[0].mxu0
    %352 = vmatprep.mubr.bf16.mxu0 0
    %353 = vmatmul.mubr.bf16.gmra.mrb[0].mxu0 %v218
    %v354 = vpop.f32.mrb[0].mxu0
    %v355 = vadd.f32 %v77, %v354
    %v356 = vpop.f32.mrb[0].mxu0
    %v357 = vpop.f32.mrb[0].mxu0
    %v358 = vadd.f32 %v77, %v357
    %v359 = vpop.f32.mrb[0].mxu0
    %360 = vmatprep.mubr.bf16.mxu0 0
    %361 = vmatmul.mubr.bf16.gmra.mrb[0].mxu0 %v221
    %v362 = vpop.f32.mrb[0].mxu0
    %v363 = vadd.f32 %v77, %v362
    %v364 = vpop.f32.mrb[0].mxu0
    %v365 = vpop.f32.mrb[0].mxu0
    %v366 = vadd.f32 %v77, %v365
    %v367 = vpop.f32.mrb[0].mxu0
    %368 = vmatprep.mubr.bf16.mxu0 0
    %369 = vmatmul.mubr.bf16.gmra.mrb[0].mxu0 %v224
    %v370 = vpop.f32.mrb[0].mxu0
    %v371 = vadd.f32 %v77, %v370
    %v372 = vpop.f32.mrb[0].mxu0
    %v373 = vpop.f32.mrb[0].mxu0
    %v374 = vadd.f32 %v77, %v373
    %v375 = vpop.f32.mrb[0].mxu0
    %376 = vmatprep.mubr.bf16.mxu0 0
    %377 = vmatmul.mubr.bf16.gmra.mrb[0].mxu0 %v227
    %v378 = vpop.f32.mrb[0].mxu0
    %v379 = vadd.f32 %v77, %v378
    %v380 = vpop.f32.mrb[0].mxu0
    %v381 = vpop.f32.mrb[0].mxu0
    %v382 = vadd.f32 %v77, %v381
    %v383 = vpop.f32.mrb[0].mxu0
    %384 = vmatprep.mubr.bf16.mxu0 0
    %385 = vmatmul.mubr.bf16.gmra.mrb[0].mxu0 %v230
    %v386 = vpop.f32.mrb[0].mxu0
    %v387 = vadd.f32 %v77, %v386
    %v388 = vpop.f32.mrb[0].mxu0
    %v389 = vpop.f32.mrb[0].mxu0
    %v390 = vadd.f32 %v77, %v389
    %v391 = vpop.f32.mrb[0].mxu0
    %392 = vdwg.mxu0
    %v393 = vmax.f32 %v267, 0.0
    %v394 = vmax.f32 %v270, 0.0
    %v395 = vmax.f32 %v275, 0.0
    %v396 = vmax.f32 %v278, 0.0
    %v397 = vmax.f32 %v283, 0.0
    %v398 = vmax.f32 %v286, 0.0
    %v399 = vmax.f32 %v291, 0.0
    %v400 = vmax.f32 %v294, 0.0
    %v401 = vmax.f32 %v299, 0.0
    %v402 = vmax.f32 %v302, 0.0
    %v403 = vmax.f32 %v307, 0.0
    %v404 = vmax.f32 %v310, 0.0
    %v405 = vmax.f32 %v315, 0.0
    %v406 = vmax.f32 %v318, 0.0
    %v407 = vmax.f32 %v323, 0.0
    %v408 = vmax.f32 %v326, 0.0
    %v409 = vmax.f32 %v331, 0.0
    %v410 = vmax.f32 %v334, 0.0
    %v411 = vmax.f32 %v339, 0.0
    %v412 = vmax.f32 %v342, 0.0
    %v413 = vmax.f32 %v347, 0.0
    %v414 = vmax.f32 %v350, 0.0
    %v415 = vmax.f32 %v355, 0.0
    %v416 = vmax.f32 %v358, 0.0
    %v417 = vmax.f32 %v363, 0.0
    %v418 = vmax.f32 %v366, 0.0
    %v419 = vmax.f32 %v371, 0.0
    %v420 = vmax.f32 %v374, 0.0
    %v421 = vmax.f32 %v379, 0.0
    %v422 = vmax.f32 %v382, 0.0
    %v423 = vmax.f32 %v387, 0.0
    %v424 = vmax.f32 %v390, 0.0
    %v425 = vpack.c.bf16 %v394, %v393
    %v426 = vpack.c.bf16 %v396, %v395
    %v427 = vpack.c.bf16 %v398, %v397
    %v428 = vpack.c.bf16 %v400, %v399
    %v429 = vpack.c.bf16 %v402, %v401
    %v430 = vpack.c.bf16 %v404, %v403
    %v431 = vpack.c.bf16 %v406, %v405
    %v432 = vpack.c.bf16 %v408, %v407
    %v433 = vpack.c.bf16 %v410, %v409
    %v434 = vpack.c.bf16 %v412, %v411
    %v435 = vpack.c.bf16 %v414, %v413
    %v436 = vpack.c.bf16 %v416, %v415
    %v437 = vpack.c.bf16 %v418, %v417
    %v438 = vpack.c.bf16 %v420, %v419
    %v439 = vpack.c.bf16 %v422, %v421
    %v440 = vpack.c.bf16 %v424, %v423
    %v441 = vld [vmem:[#allocation2] sm:$0xf]
    %v442 = vld [vmem:[#allocation2 + $0x4] sm:$0xf]
    %v443 = vld [vmem:[#allocation2 + $0x8] sm:$0xf]
    %v444 = vld [vmem:[#allocation2 + $0xc] sm:$0xf]
    %v445 = vld [vmem:[#allocation2 + $0x10] sm:$0xf]
    %v446 = vld [vmem:[#allocation2 + $0x14] sm:$0xf]
    %v447 = vld [vmem:[#allocation2 + $0x18] sm:$0xf]
    %v448 = vld [vmem:[#allocation2 + $0x1c] sm:$0xf]
    %v449 = vld [vmem:[#allocation2 + $0x20] sm:$0xf]
    %v450 = vld [vmem:[#allocation2 + $0x24] sm:$0xf]
    %v451 = vld [vmem:[#allocation2 + $0x28] sm:$0xf]
    %v452 = vld [vmem:[#allocation2 + $0x2c] sm:$0xf]
    %v453 = vld [vmem:[#allocation2 + $0x30] sm:$0xf]
    %v454 = vld [vmem:[#allocation2 + $0x34] sm:$0xf]
    %v455 = vld [vmem:[#allocation2 + $0x38] sm:$0xf]
    %v456 = vld [vmem:[#allocation2 + $0x3c] sm:$0xf]
    %s457 = scalar_lea.vmem %s3, 1
    %v458 = vld [vmem:[%s457] sm:$0x1]
    %v460 = vlaneseq
    %v461 = vshrl.u32 %v460, 7
    %v462 = vsub.s32 0, %v461
    %v463 = vrot.slane %v458, %v462
    %v481 = vunpack.c.l.b16 %v441
    %v482 = vunpack.c.l.b16 %v442
    %v483 = vunpack.c.l.b16 %v443
    %v484 = vunpack.c.l.b16 %v444
    %v485 = vunpack.c.l.b16 %v445
    %v486 = vunpack.c.l.b16 %v446
    %v487 = vunpack.c.l.b16 %v447
    %v488 = vunpack.c.l.b16 %v448
    %v489 = vunpack.c.l.b16 %v449
    %v490 = vunpack.c.l.b16 %v450
    %v491 = vunpack.c.l.b16 %v451
    %v492 = vunpack.c.l.b16 %v452
    %v493 = vunpack.c.l.b16 %v453
    %v494 = vunpack.c.l.b16 %v454
    %v495 = vunpack.c.l.b16 %v455
    %v496 = vunpack.c.l.b16 %v456
    %v497 = vpack.c.b16 %v482, %v481
    %v498 = vpack.c.b16 %v484, %v483
    %v499 = vpack.c.b16 %v486, %v485
    %v500 = vpack.c.b16 %v488, %v487
    %v501 = vpack.c.b16 %v490, %v489
    %v502 = vpack.c.b16 %v492, %v491
    %v503 = vpack.c.b16 %v494, %v493
    %v504 = vpack.c.b16 %v496, %v495
    %513 = vmatprep.subr.bf16.mxu0 0
    %514 = vmatpush1.bf16.msra.mxu0 %v497
    %515 = vmatprep.subr.bf16.mxu0 0
    %516 = vmatpush1.bf16.msra.mxu0 %v498
    %517 = vmatprep.subr.bf16.mxu0 0
    %518 = vmatpush1.bf16.msra.mxu0 %v499
    %519 = vmatprep.subr.bf16.mxu0 0
    %520 = vmatpush1.bf16.msra.mxu0 %v500
    %521 = vmatprep.subr.bf16.mxu0 0
    %522 = vmatpush1.bf16.msra.mxu0 %v501
    %523 = vmatprep.subr.bf16.mxu0 0
    %524 = vmatpush1.bf16.msra.mxu0 %v502
    %525 = vmatprep.subr.bf16.mxu0 0
    %526 = vmatpush1.bf16.msra.mxu0 %v503
    %527 = vmatprep.subr.bf16.mxu0 0
    %528 = vmatpush1.bf16.msra.mxu0 %v504
    %529 = vmatprep.subr.bf16.mxu0 0
    %530 = vmatpush1.bf16.msra.mxu0 0
    %531 = vmatprep.subr.bf16.mxu0 0
    %532 = vmatpush1.bf16.msra.mxu0 0
    %533 = vmatprep.subr.bf16.mxu0 0
    %534 = vmatpush1.bf16.msra.mxu0 0
    %535 = vmatprep.subr.bf16.mxu0 0
    %536 = vmatpush1.bf16.msra.mxu0 0
    %537 = vmatprep.subr.bf16.mxu0 0
    %538 = vmatpush1.bf16.msra.mxu0 0
    %539 = vmatprep.subr.bf16.mxu0 0
    %540 = vmatpush1.bf16.msra.mxu0 0
    %541 = vmatprep.subr.bf16.mxu0 0
    %542 = vmatpush1.bf16.msra.mxu0 0
    %543 = vmatprep.subr.bf16.mxu0 0
    %544 = vmatpush1.bf16.msra.mxu0 0
    %545 = vmatprep.mubr.bf16.mxu0 0
    %546 = vmatmul.mubr.bf16.gmra.mrb[0].mxu0 %v425
    %v547 = vpop.f32.mrb[0].mxu0
    %v548 = vadd.f32 %v463, %v547
    %v549 = vpop.f32.mrb[0].mxu0
    %v550 = vpop.f32.mrb[0].mxu0
    %v551 = vadd.f32 %v463, %v550
    %v552 = vpop.f32.mrb[0].mxu0
    %553 = vmatprep.mubr.bf16.mxu0 0
    %554 = vmatmul.mubr.bf16.gmra.mrb[0].mxu0 %v426
    %v555 = vpop.f32.mrb[0].mxu0
    %v556 = vadd.f32 %v463, %v555
    %v557 = vpop.f32.mrb[0].mxu0
    %v558 = vpop.f32.mrb[0].mxu0
    %v559 = vadd.f32 %v463, %v558
    %v560 = vpop.f32.mrb[0].mxu0
    %561 = vmatprep.mubr.bf16.mxu0 0
    %562 = vmatmul.mubr.bf16.gmra.mrb[0].mxu0 %v427
    %v563 = vpop.f32.mrb[0].mxu0
    %v564 = vadd.f32 %v463, %v563
    %v565 = vpop.f32.mrb[0].mxu0
    %v566 = vpop.f32.mrb[0].mxu0
    %v567 = vadd.f32 %v463, %v566
    %v568 = vpop.f32.mrb[0].mxu0
    %569 = vmatprep.mubr.bf16.mxu0 0
    %570 = vmatmul.mubr.bf16.gmra.mrb[0].mxu0 %v428
    %v571 = vpop.f32.mrb[0].mxu0
    %v572 = vadd.f32 %v463, %v571
    %v573 = vpop.f32.mrb[0].mxu0
    %v574 = vpop.f32.mrb[0].mxu0
    %v575 = vadd.f32 %v463, %v574
    %v576 = vpop.f32.mrb[0].mxu0
    %577 = vmatprep.mubr.bf16.mxu0 0
    %578 = vmatmul.mubr.bf16.gmra.mrb[0].mxu0 %v429
    %v579 = vpop.f32.mrb[0].mxu0
    %v580 = vadd.f32 %v463, %v579
    %v581 = vpop.f32.mrb[0].mxu0
    %v582 = vpop.f32.mrb[0].mxu0
    %v583 = vadd.f32 %v463, %v582
    %v584 = vpop.f32.mrb[0].mxu0
    %585 = vmatprep.mubr.bf16.mxu0 0
    %586 = vmatmul.mubr.bf16.gmra.mrb[0].mxu0 %v430
    %v587 = vpop.f32.mrb[0].mxu0
    %v588 = vadd.f32 %v463, %v587
    %v589 = vpop.f32.mrb[0].mxu0
    %v590 = vpop.f32.mrb[0].mxu0
    %v591 = vadd.f32 %v463, %v590
    %v592 = vpop.f32.mrb[0].mxu0
    %593 = vmatprep.mubr.bf16.mxu0 0
    %594 = vmatmul.mubr.bf16.gmra.mrb[0].mxu0 %v431
    %v595 = vpop.f32.mrb[0].mxu0
    %v596 = vadd.f32 %v463, %v595
    %v597 = vpop.f32.mrb[0].mxu0
    %v598 = vpop.f32.mrb[0].mxu0
    %v599 = vadd.f32 %v463, %v598
    %v600 = vpop.f32.mrb[0].mxu0
    %601 = vmatprep.mubr.bf16.mxu0 0
    %602 = vmatmul.mubr.bf16.gmra.mrb[0].mxu0 %v432
    %v603 = vpop.f32.mrb[0].mxu0
    %v604 = vadd.f32 %v463, %v603
    %v605 = vpop.f32.mrb[0].mxu0
    %v606 = vpop.f32.mrb[0].mxu0
    %v607 = vadd.f32 %v463, %v606
    %v608 = vpop.f32.mrb[0].mxu0
    %609 = vmatprep.mubr.bf16.mxu0 0
    %610 = vmatmul.mubr.bf16.gmra.mrb[0].mxu0 %v433
    %v611 = vpop.f32.mrb[0].mxu0
    %v612 = vadd.f32 %v463, %v611
    %v613 = vpop.f32.mrb[0].mxu0
    %v614 = vpop.f32.mrb[0].mxu0
    %v615 = vadd.f32 %v463, %v614
    %v616 = vpop.f32.mrb[0].mxu0
    %617 = vmatprep.mubr.bf16.mxu0 0
    %618 = vmatmul.mubr.bf16.gmra.mrb[0].mxu0 %v434
    %v619 = vpop.f32.mrb[0].mxu0
    %v620 = vadd.f32 %v463, %v619
    %v621 = vpop.f32.mrb[0].mxu0
    %v622 = vpop.f32.mrb[0].mxu0
    %v623 = vadd.f32 %v463, %v622
    %v624 = vpop.f32.mrb[0].mxu0
    %625 = vmatprep.mubr.bf16.mxu0 0
    %626 = vmatmul.mubr.bf16.gmra.mrb[0].mxu0 %v435
    %v627 = vpop.f32.mrb[0].mxu0
    %v628 = vadd.f32 %v463, %v627
    %v629 = vpop.f32.mrb[0].mxu0
    %v630 = vpop.f32.mrb[0].mxu0
    %v631 = vadd.f32 %v463, %v630
    %v632 = vpop.f32.mrb[0].mxu0
    %633 = vmatprep.mubr.bf16.mxu0 0
    %634 = vmatmul.mubr.bf16.gmra.mrb[0].mxu0 %v436
    %v635 = vpop.f32.mrb[0].mxu0
    %v636 = vadd.f32 %v463, %v635
    %v637 = vpop.f32.mrb[0].mxu0
    %v638 = vpop.f32.mrb[0].mxu0
    %v639 = vadd.f32 %v463, %v638
    %v640 = vpop.f32.mrb[0].mxu0
    %641 = vmatprep.mubr.bf16.mxu0 0
    %642 = vmatmul.mubr.bf16.gmra.mrb[0].mxu0 %v437
    %v643 = vpop.f32.mrb[0].mxu0
    %v644 = vadd.f32 %v463, %v643
    %v645 = vpop.f32.mrb[0].mxu0
    %v646 = vpop.f32.mrb[0].mxu0
    %v647 = vadd.f32 %v463, %v646
    %v648 = vpop.f32.mrb[0].mxu0
    %649 = vmatprep.mubr.bf16.mxu0 0
    %650 = vmatmul.mubr.bf16.gmra.mrb[0].mxu0 %v438
    %v651 = vpop.f32.mrb[0].mxu0
    %v652 = vadd.f32 %v463, %v651
    %v653 = vpop.f32.mrb[0].mxu0
    %v654 = vpop.f32.mrb[0].mxu0
    %v655 = vadd.f32 %v463, %v654
    %v656 = vpop.f32.mrb[0].mxu0
    %657 = vmatprep.mubr.bf16.mxu0 0
    %658 = vmatmul.mubr.bf16.gmra.mrb[0].mxu0 %v439
    %v659 = vpop.f32.mrb[0].mxu0
    %v660 = vadd.f32 %v463, %v659
    %v661 = vpop.f32.mrb[0].mxu0
    %v662 = vpop.f32.mrb[0].mxu0
    %v663 = vadd.f32 %v463, %v662
    %v664 = vpop.f32.mrb[0].mxu0
    %665 = vmatprep.mubr.bf16.mxu0 0
    %666 = vmatmul.mubr.bf16.gmra.mrb[0].mxu0 %v440
    %v667 = vpop.f32.mrb[0].mxu0
    %v668 = vadd.f32 %v463, %v667
    %v669 = vpop.f32.mrb[0].mxu0
    %v670 = vpop.f32.mrb[0].mxu0
    %v671 = vadd.f32 %v463, %v670
    %v672 = vpop.f32.mrb[0].mxu0
    %673 = vdwg.mxu0
    %v674 = vmax.f32 %v548, 0.0
    %v675 = vmax.f32 %v551, 0.0
    %v676 = vmax.f32 %v556, 0.0
    %v677 = vmax.f32 %v559, 0.0
    %v678 = vmax.f32 %v564, 0.0
    %v679 = vmax.f32 %v567, 0.0
    %v680 = vmax.f32 %v572, 0.0
    %v681 = vmax.f32 %v575, 0.0
    %v682 = vmax.f32 %v580, 0.0
    %v683 = vmax.f32 %v583, 0.0
    %v684 = vmax.f32 %v588, 0.0
    %v685 = vmax.f32 %v591, 0.0
    %v686 = vmax.f32 %v596, 0.0
    %v687 = vmax.f32 %v599, 0.0
    %v688 = vmax.f32 %v604, 0.0
    %v689 = vmax.f32 %v607, 0.0
    %v690 = vmax.f32 %v612, 0.0
    %v691 = vmax.f32 %v615, 0.0
    %v692 = vmax.f32 %v620, 0.0
    %v693 = vmax.f32 %v623, 0.0
    %v694 = vmax.f32 %v628, 0.0
    %v695 = vmax.f32 %v631, 0.0
    %v696 = vmax.f32 %v636, 0.0
    %v697 = vmax.f32 %v639, 0.0
    %v698 = vmax.f32 %v644, 0.0
    %v699 = vmax.f32 %v647, 0.0
    %v700 = vmax.f32 %v652, 0.0
    %v701 = vmax.f32 %v655, 0.0
    %v702 = vmax.f32 %v660, 0.0
    %v703 = vmax.f32 %v663, 0.0
    %v704 = vmax.f32 %v668, 0.0
    %v705 = vmax.f32 %v671, 0.0
    %v706 = vpack.c.bf16 %v675, %v674
    %v707 = vpack.c.bf16 %v677, %v676
    %v708 = vpack.c.bf16 %v679, %v678
    %v709 = vpack.c.bf16 %v681, %v680
    %v710 = vpack.c.bf16 %v683, %v682
    %v711 = vpack.c.bf16 %v685, %v684
    %v712 = vpack.c.bf16 %v687, %v686
    %v713 = vpack.c.bf16 %v689, %v688
    %v714 = vpack.c.bf16 %v691, %v690
    %v715 = vpack.c.bf16 %v693, %v692
    %v716 = vpack.c.bf16 %v695, %v694
    %v717 = vpack.c.bf16 %v697, %v696
    %v718 = vpack.c.bf16 %v699, %v698
    %v719 = vpack.c.bf16 %v701, %v700
    %v720 = vpack.c.bf16 %v703, %v702
    %v721 = vpack.c.bf16 %v705, %v704
    %s722 = scalar_lea.vmem [#allocation2], 64
    %v723 = vld [vmem:[%s722] sm:$0xf]
    %v724 = vld [vmem:[%s722 + $0x4] sm:$0xf]
    %v725 = vld [vmem:[%s722 + $0x8] sm:$0xf]
    %v726 = vld [vmem:[%s722 + $0xc] sm:$0xf]
    %v727 = vld [vmem:[%s722 + $0x10] sm:$0xf]
    %v728 = vld [vmem:[%s722 + $0x14] sm:$0xf]
    %v729 = vld [vmem:[%s722 + $0x18] sm:$0xf]
    %v730 = vld [vmem:[%s722 + $0x1c] sm:$0xf]
    %v731 = vld [vmem:[%s722 + $0x20] sm:$0xf]
    %v732 = vld [vmem:[%s722 + $0x24] sm:$0xf]
    %v733 = vld [vmem:[%s722 + $0x28] sm:$0xf]
    %v734 = vld [vmem:[%s722 + $0x2c] sm:$0xf]
    %v735 = vld [vmem:[%s722 + $0x30] sm:$0xf]
    %v736 = vld [vmem:[%s722 + $0x34] sm:$0xf]
    %v737 = vld [vmem:[%s722 + $0x38] sm:$0xf]
    %v738 = vld [vmem:[%s722 + $0x3c] sm:$0xf]
    %s739 = scalar_lea.vmem %s3, 2
    %v740 = vld [vmem:[%s739] sm:$0x1]
    %v742 = vlaneseq
    %v743 = vshrl.u32 %v742, 7
    %v744 = vsub.s32 0, %v743
    %v745 = vrot.slane %v740, %v744
    %v763 = vunpack.c.l.b16 %v723
    %v764 = vunpack.c.l.b16 %v724
    %v765 = vunpack.c.l.b16 %v725
    %v766 = vunpack.c.l.b16 %v726
    %v767 = vunpack.c.l.b16 %v727
    %v768 = vunpack.c.l.b16 %v728
    %v769 = vunpack.c.l.b16 %v729
    %v770 = vunpack.c.l.b16 %v730
    %v771 = vunpack.c.l.b16 %v731
    %v772 = vunpack.c.l.b16 %v732
    %v773 = vunpack.c.l.b16 %v733
    %v774 = vunpack.c.l.b16 %v734
    %v775 = vunpack.c.l.b16 %v735
    %v776 = vunpack.c.l.b16 %v736
    %v777 = vunpack.c.l.b16 %v737
    %v778 = vunpack.c.l.b16 %v738
    %v779 = vpack.c.b16 %v764, %v763
    %v780 = vpack.c.b16 %v766, %v765
    %v781 = vpack.c.b16 %v768, %v767
    %v782 = vpack.c.b16 %v770, %v769
    %v783 = vpack.c.b16 %v772, %v771
    %v784 = vpack.c.b16 %v774, %v773
    %v785 = vpack.c.b16 %v776, %v775
    %v786 = vpack.c.b16 %v778, %v777
    %795 = vmatprep.subr.bf16.mxu0 0
    %796 = vmatpush1.bf16.msra.mxu0 %v779
    %797 = vmatprep.subr.bf16.mxu0 0
    %798 = vmatpush1.bf16.msra.mxu0 %v780
    %799 = vmatprep.subr.bf16.mxu0 0
    %800 = vmatpush1.bf16.msra.mxu0 %v781
    %801 = vmatprep.subr.bf16.mxu0 0
    %802 = vmatpush1.bf16.msra.mxu0 %v782
    %803 = vmatprep.subr.bf16.mxu0 0
    %804 = vmatpush1.bf16.msra.mxu0 %v783
    %805 = vmatprep.subr.bf16.mxu0 0
    %806 = vmatpush1.bf16.msra.mxu0 %v784
    %807 = vmatprep.subr.bf16.mxu0 0
    %808 = vmatpush1.bf16.msra.mxu0 %v785
    %809 = vmatprep.subr.bf16.mxu0 0
    %810 = vmatpush1.bf16.msra.mxu0 %v786
    %811 = vmatprep.subr.bf16.mxu0 0
    %812 = vmatpush1.bf16.msra.mxu0 0
    %813 = vmatprep.subr.bf16.mxu0 0
    %814 = vmatpush1.bf16.msra.mxu0 0
    %815 = vmatprep.subr.bf16.mxu0 0
    %816 = vmatpush1.bf16.msra.mxu0 0
    %817 = vmatprep.subr.bf16.mxu0 0
    %818 = vmatpush1.bf16.msra.mxu0 0
    %819 = vmatprep.subr.bf16.mxu0 0
    %820 = vmatpush1.bf16.msra.mxu0 0
    %821 = vmatprep.subr.bf16.mxu0 0
    %822 = vmatpush1.bf16.msra.mxu0 0
    %823 = vmatprep.subr.bf16.mxu0 0
    %824 = vmatpush1.bf16.msra.mxu0 0
    %825 = vmatprep.subr.bf16.mxu0 0
    %826 = vmatpush1.bf16.msra.mxu0 0
    %827 = vmatprep.mubr.bf16.mxu0 0
    %828 = vmatmul.mubr.bf16.gmra.mrb[0].mxu0 %v706
    %v829 = vpop.f32.mrb[0].mxu0
    %v830 = vadd.f32 %v745, %v829
    %v831 = vpop.f32.mrb[0].mxu0
    %v832 = vpop.f32.mrb[0].mxu0
    %v833 = vadd.f32 %v745, %v832
    %v834 = vpop.f32.mrb[0].mxu0
    %835 = vmatprep.mubr.bf16.mxu0 0
    %836 = vmatmul.mubr.bf16.gmra.mrb[0].mxu0 %v707
    %v837 = vpop.f32.mrb[0].mxu0
    %v838 = vadd.f32 %v745, %v837
    %v839 = vpop.f32.mrb[0].mxu0
    %v840 = vpop.f32.mrb[0].mxu0
    %v841 = vadd.f32 %v745, %v840
    %v842 = vpop.f32.mrb[0].mxu0
    %843 = vmatprep.mubr.bf16.mxu0 0
    %844 = vmatmul.mubr.bf16.gmra.mrb[0].mxu0 %v708
    %v845 = vpop.f32.mrb[0].mxu0
    %v846 = vadd.f32 %v745, %v845
    %v847 = vpop.f32.mrb[0].mxu0
    %v848 = vpop.f32.mrb[0].mxu0
    %v849 = vadd.f32 %v745, %v848
    %v850 = vpop.f32.mrb[0].mxu0
    %851 = vmatprep.mubr.bf16.mxu0 0
    %852 = vmatmul.mubr.bf16.gmra.mrb[0].mxu0 %v709
    %v853 = vpop.f32.mrb[0].mxu0
    %v854 = vadd.f32 %v745, %v853
    %v855 = vpop.f32.mrb[0].mxu0
    %v856 = vpop.f32.mrb[0].mxu0
    %v857 = vadd.f32 %v745, %v856
    %v858 = vpop.f32.mrb[0].mxu0
    %859 = vmatprep.mubr.bf16.mxu0 0
    %860 = vmatmul.mubr.bf16.gmra.mrb[0].mxu0 %v710
    %v861 = vpop.f32.mrb[0].mxu0
    %v862 = vadd.f32 %v745, %v861
    %v863 = vpop.f32.mrb[0].mxu0
    %v864 = vpop.f32.mrb[0].mxu0
    %v865 = vadd.f32 %v745, %v864
    %v866 = vpop.f32.mrb[0].mxu0
    %867 = vmatprep.mubr.bf16.mxu0 0
    %868 = vmatmul.mubr.bf16.gmra.mrb[0].mxu0 %v711
    %v869 = vpop.f32.mrb[0].mxu0
    %v870 = vadd.f32 %v745, %v869
    %v871 = vpop.f32.mrb[0].mxu0
    %v872 = vpop.f32.mrb[0].mxu0
    %v873 = vadd.f32 %v745, %v872
    %v874 = vpop.f32.mrb[0].mxu0
    %875 = vmatprep.mubr.bf16.mxu0 0
    %876 = vmatmul.mubr.bf16.gmra.mrb[0].mxu0 %v712
    %v877 = vpop.f32.mrb[0].mxu0
    %v878 = vadd.f32 %v745, %v877
    %v879 = vpop.f32.mrb[0].mxu0
    %v880 = vpop.f32.mrb[0].mxu0
    %v881 = vadd.f32 %v745, %v880
    %v882 = vpop.f32.mrb[0].mxu0
    %883 = vmatprep.mubr.bf16.mxu0 0
    %884 = vmatmul.mubr.bf16.gmra.mrb[0].mxu0 %v713
    %v885 = vpop.f32.mrb[0].mxu0
    %v886 = vadd.f32 %v745, %v885
    %v887 = vpop.f32.mrb[0].mxu0
    %v888 = vpop.f32.mrb[0].mxu0
    %v889 = vadd.f32 %v745, %v888
    %v890 = vpop.f32.mrb[0].mxu0
    %891 = vmatprep.mubr.bf16.mxu0 0
    %892 = vmatmul.mubr.bf16.gmra.mrb[0].mxu0 %v714
    %v893 = vpop.f32.mrb[0].mxu0
    %v894 = vadd.f32 %v745, %v893
    %v895 = vpop.f32.mrb[0].mxu0
    %v896 = vpop.f32.mrb[0].mxu0
    %v897 = vadd.f32 %v745, %v896
    %v898 = vpop.f32.mrb[0].mxu0
    %899 = vmatprep.mubr.bf16.mxu0 0
    %900 = vmatmul.mubr.bf16.gmra.mrb[0].mxu0 %v715
    %v901 = vpop.f32.mrb[0].mxu0
    %v902 = vadd.f32 %v745, %v901
    %v903 = vpop.f32.mrb[0].mxu0
    %v904 = vpop.f32.mrb[0].mxu0
    %v905 = vadd.f32 %v745, %v904
    %v906 = vpop.f32.mrb[0].mxu0
    %907 = vmatprep.mubr.bf16.mxu0 0
    %908 = vmatmul.mubr.bf16.gmra.mrb[0].mxu0 %v716
    %v909 = vpop.f32.mrb[0].mxu0
    %v910 = vadd.f32 %v745, %v909
    %v911 = vpop.f32.mrb[0].mxu0
    %v912 = vpop.f32.mrb[0].mxu0
    %v913 = vadd.f32 %v745, %v912
    %v914 = vpop.f32.mrb[0].mxu0
    %915 = vmatprep.mubr.bf16.mxu0 0
    %916 = vmatmul.mubr.bf16.gmra.mrb[0].mxu0 %v717
    %v917 = vpop.f32.mrb[0].mxu0
    %v918 = vadd.f32 %v745, %v917
    %v919 = vpop.f32.mrb[0].mxu0
    %v920 = vpop.f32.mrb[0].mxu0
    %v921 = vadd.f32 %v745, %v920
    %v922 = vpop.f32.mrb[0].mxu0
    %923 = vmatprep.mubr.bf16.mxu0 0
    %924 = vmatmul.mubr.bf16.gmra.mrb[0].mxu0 %v718
    %v925 = vpop.f32.mrb[0].mxu0
    %v926 = vadd.f32 %v745, %v925
    %v927 = vpop.f32.mrb[0].mxu0
    %v928 = vpop.f32.mrb[0].mxu0
    %v929 = vadd.f32 %v745, %v928
    %v930 = vpop.f32.mrb[0].mxu0
    %931 = vmatprep.mubr.bf16.mxu0 0
    %932 = vmatmul.mubr.bf16.gmra.mrb[0].mxu0 %v719
    %v933 = vpop.f32.mrb[0].mxu0
    %v934 = vadd.f32 %v745, %v933
    %v935 = vpop.f32.mrb[0].mxu0
    %v936 = vpop.f32.mrb[0].mxu0
    %v937 = vadd.f32 %v745, %v936
    %v938 = vpop.f32.mrb[0].mxu0
    %939 = vmatprep.mubr.bf16.mxu0 0
    %940 = vmatmul.mubr.bf16.gmra.mrb[0].mxu0 %v720
    %v941 = vpop.f32.mrb[0].mxu0
    %v942 = vadd.f32 %v745, %v941
    %v943 = vpop.f32.mrb[0].mxu0
    %v944 = vpop.f32.mrb[0].mxu0
    %v945 = vadd.f32 %v745, %v944
    %v946 = vpop.f32.mrb[0].mxu0
    %947 = vmatprep.mubr.bf16.mxu0 0
    %948 = vmatmul.mubr.bf16.gmra.mrb[0].mxu0 %v721
    %v949 = vpop.f32.mrb[0].mxu0
    %v950 = vadd.f32 %v745, %v949
    %v951 = vpop.f32.mrb[0].mxu0
    %v952 = vpop.f32.mrb[0].mxu0
    %v953 = vadd.f32 %v745, %v952
    %v954 = vpop.f32.mrb[0].mxu0
    %955 = vdwg.mxu0
    %v956 = vmax.f32 %v830, 0.0
    %v957 = vmax.f32 %v833, 0.0
    %v958 = vmax.f32 %v838, 0.0
    %v959 = vmax.f32 %v841, 0.0
    %v960 = vmax.f32 %v846, 0.0
    %v961 = vmax.f32 %v849, 0.0
    %v962 = vmax.f32 %v854, 0.0
    %v963 = vmax.f32 %v857, 0.0
    %v964 = vmax.f32 %v862, 0.0
    %v965 = vmax.f32 %v865, 0.0
    %v966 = vmax.f32 %v870, 0.0
    %v967 = vmax.f32 %v873, 0.0
    %v968 = vmax.f32 %v878, 0.0
    %v969 = vmax.f32 %v881, 0.0
    %v970 = vmax.f32 %v886, 0.0
    %v971 = vmax.f32 %v889, 0.0
    %v972 = vmax.f32 %v894, 0.0
    %v973 = vmax.f32 %v897, 0.0
    %v974 = vmax.f32 %v902, 0.0
    %v975 = vmax.f32 %v905, 0.0
    %v976 = vmax.f32 %v910, 0.0
    %v977 = vmax.f32 %v913, 0.0
    %v978 = vmax.f32 %v918, 0.0
    %v979 = vmax.f32 %v921, 0.0
    %v980 = vmax.f32 %v926, 0.0
    %v981 = vmax.f32 %v929, 0.0
    %v982 = vmax.f32 %v934, 0.0
    %v983 = vmax.f32 %v937, 0.0
    %v984 = vmax.f32 %v942, 0.0
    %v985 = vmax.f32 %v945, 0.0
    %v986 = vmax.f32 %v950, 0.0
    %v987 = vmax.f32 %v953, 0.0
    %v988 = vpack.c.bf16 %v957, %v956
    %v989 = vpack.c.bf16 %v959, %v958
    %v990 = vpack.c.bf16 %v961, %v960
    %v991 = vpack.c.bf16 %v963, %v962
    %v992 = vpack.c.bf16 %v965, %v964
    %v993 = vpack.c.bf16 %v967, %v966
    %v994 = vpack.c.bf16 %v969, %v968
    %v995 = vpack.c.bf16 %v971, %v970
    %v996 = vpack.c.bf16 %v973, %v972
    %v997 = vpack.c.bf16 %v975, %v974
    %v998 = vpack.c.bf16 %v977, %v976
    %v999 = vpack.c.bf16 %v979, %v978
    %v1000 = vpack.c.bf16 %v981, %v980
    %v1001 = vpack.c.bf16 %v983, %v982
    %v1002 = vpack.c.bf16 %v985, %v984
    %v1003 = vpack.c.bf16 %v987, %v986
    %s1004 = scalar_lea.vmem [#allocation2], 128
    %v1005 = vld [vmem:[%s1004] sm:$0xf]
    %v1006 = vld [vmem:[%s1004 + $0x4] sm:$0xf]
    %v1007 = vld [vmem:[%s1004 + $0x8] sm:$0xf]
    %v1008 = vld [vmem:[%s1004 + $0xc] sm:$0xf]
    %v1009 = vld [vmem:[%s1004 + $0x10] sm:$0xf]
    %v1010 = vld [vmem:[%s1004 + $0x14] sm:$0xf]
    %v1011 = vld [vmem:[%s1004 + $0x18] sm:$0xf]
    %v1012 = vld [vmem:[%s1004 + $0x1c] sm:$0xf]
    %v1013 = vld [vmem:[%s1004 + $0x20] sm:$0xf]
    %v1014 = vld [vmem:[%s1004 + $0x24] sm:$0xf]
    %v1015 = vld [vmem:[%s1004 + $0x28] sm:$0xf]
    %v1016 = vld [vmem:[%s1004 + $0x2c] sm:$0xf]
    %v1017 = vld [vmem:[%s1004 + $0x30] sm:$0xf]
    %v1018 = vld [vmem:[%s1004 + $0x34] sm:$0xf]
    %v1019 = vld [vmem:[%s1004 + $0x38] sm:$0xf]
    %v1020 = vld [vmem:[%s1004 + $0x3c] sm:$0xf]
    %s1021 = scalar_lea.vmem %s3, 3
    %v1022 = vld [vmem:[%s1021] sm:$0x1]
    %v1024 = vlaneseq
    %v1025 = vshrl.u32 %v1024, 7
    %v1026 = vsub.s32 0, %v1025
    %v1027 = vrot.slane %v1022, %v1026
    %v1045 = vunpack.c.l.b16 %v1005
    %v1046 = vunpack.c.l.b16 %v1006
    %v1047 = vunpack.c.l.b16 %v1007
    %v1048 = vunpack.c.l.b16 %v1008
    %v1049 = vunpack.c.l.b16 %v1009
    %v1050 = vunpack.c.l.b16 %v1010
    %v1051 = vunpack.c.l.b16 %v1011
    %v1052 = vunpack.c.l.b16 %v1012
    %v1053 = vunpack.c.l.b16 %v1013
    %v1054 = vunpack.c.l.b16 %v1014
    %v1055 = vunpack.c.l.b16 %v1015
    %v1056 = vunpack.c.l.b16 %v1016
    %v1057 = vunpack.c.l.b16 %v1017
    %v1058 = vunpack.c.l.b16 %v1018
    %v1059 = vunpack.c.l.b16 %v1019
    %v1060 = vunpack.c.l.b16 %v1020
    %v1061 = vpack.c.b16 %v1046, %v1045
    %v1062 = vpack.c.b16 %v1048, %v1047
    %v1063 = vpack.c.b16 %v1050, %v1049
    %v1064 = vpack.c.b16 %v1052, %v1051
    %v1065 = vpack.c.b16 %v1054, %v1053
    %v1066 = vpack.c.b16 %v1056, %v1055
    %v1067 = vpack.c.b16 %v1058, %v1057
    %v1068 = vpack.c.b16 %v1060, %v1059
    %1077 = vmatprep.subr.bf16.mxu0 0
    %1078 = vmatpush1.bf16.msra.mxu0 %v1061
    %1079 = vmatprep.subr.bf16.mxu0 0
    %1080 = vmatpush1.bf16.msra.mxu0 %v1062
    %1081 = vmatprep.subr.bf16.mxu0 0
    %1082 = vmatpush1.bf16.msra.mxu0 %v1063
    %1083 = vmatprep.subr.bf16.mxu0 0
    %1084 = vmatpush1.bf16.msra.mxu0 %v1064
    %1085 = vmatprep.subr.bf16.mxu0 0
    %1086 = vmatpush1.bf16.msra.mxu0 %v1065
    %1087 = vmatprep.subr.bf16.mxu0 0
    %1088 = vmatpush1.bf16.msra.mxu0 %v1066
    %1089 = vmatprep.subr.bf16.mxu0 0
    %1090 = vmatpush1.bf16.msra.mxu0 %v1067
    %1091 = vmatprep.subr.bf16.mxu0 0
    %1092 = vmatpush1.bf16.msra.mxu0 %v1068
    %1093 = vmatprep.subr.bf16.mxu0 0
    %1094 = vmatpush1.bf16.msra.mxu0 0
    %1095 = vmatprep.subr.bf16.mxu0 0
    %1096 = vmatpush1.bf16.msra.mxu0 0
    %1097 = vmatprep.subr.bf16.mxu0 0
    %1098 = vmatpush1.bf16.msra.mxu0 0
    %1099 = vmatprep.subr.bf16.mxu0 0
    %1100 = vmatpush1.bf16.msra.mxu0 0
    %1101 = vmatprep.subr.bf16.mxu0 0
    %1102 = vmatpush1.bf16.msra.mxu0 0
    %1103 = vmatprep.subr.bf16.mxu0 0
    %1104 = vmatpush1.bf16.msra.mxu0 0
    %1105 = vmatprep.subr.bf16.mxu0 0
    %1106 = vmatpush1.bf16.msra.mxu0 0
    %1107 = vmatprep.subr.bf16.mxu0 0
    %1108 = vmatpush1.bf16.msra.mxu0 0
    %1109 = vmatprep.mubr.bf16.mxu0 0
    %1110 = vmatmul.mubr.bf16.gmra.mrb[0].mxu0 %v988
    %v1111 = vpop.f32.mrb[0].mxu0
    %v1112 = vadd.f32 %v1027, %v1111
    %v1113 = vpop.f32.mrb[0].mxu0
    %v1114 = vpop.f32.mrb[0].mxu0
    %v1115 = vadd.f32 %v1027, %v1114
    %v1116 = vpop.f32.mrb[0].mxu0
    %1117 = vmatprep.mubr.bf16.mxu0 0
    %1118 = vmatmul.mubr.bf16.gmra.mrb[0].mxu0 %v989
    %v1119 = vpop.f32.mrb[0].mxu0
    %v1120 = vadd.f32 %v1027, %v1119
    %v1121 = vpop.f32.mrb[0].mxu0
    %v1122 = vpop.f32.mrb[0].mxu0
    %v1123 = vadd.f32 %v1027, %v1122
    %v1124 = vpop.f32.mrb[0].mxu0
    %1125 = vmatprep.mubr.bf16.mxu0 0
    %1126 = vmatmul.mubr.bf16.gmra.mrb[0].mxu0 %v990
    %v1127 = vpop.f32.mrb[0].mxu0
    %v1128 = vadd.f32 %v1027, %v1127
    %v1129 = vpop.f32.mrb[0].mxu0
    %v1130 = vpop.f32.mrb[0].mxu0
    %v1131 = vadd.f32 %v1027, %v1130
    %v1132 = vpop.f32.mrb[0].mxu0
    %1133 = vmatprep.mubr.bf16.mxu0 0
    %1134 = vmatmul.mubr.bf16.gmra.mrb[0].mxu0 %v991
    %v1135 = vpop.f32.mrb[0].mxu0
    %v1136 = vadd.f32 %v1027, %v1135
    %v1137 = vpop.f32.mrb[0].mxu0
    %v1138 = vpop.f32.mrb[0].mxu0
    %v1139 = vadd.f32 %v1027, %v1138
    %v1140 = vpop.f32.mrb[0].mxu0
    %1141 = vmatprep.mubr.bf16.mxu0 0
    %1142 = vmatmul.mubr.bf16.gmra.mrb[0].mxu0 %v992
    %v1143 = vpop.f32.mrb[0].mxu0
    %v1144 = vadd.f32 %v1027, %v1143
    %v1145 = vpop.f32.mrb[0].mxu0
    %v1146 = vpop.f32.mrb[0].mxu0
    %v1147 = vadd.f32 %v1027, %v1146
    %v1148 = vpop.f32.mrb[0].mxu0
    %1149 = vmatprep.mubr.bf16.mxu0 0
    %1150 = vmatmul.mubr.bf16.gmra.mrb[0].mxu0 %v993
    %v1151 = vpop.f32.mrb[0].mxu0
    %v1152 = vadd.f32 %v1027, %v1151
    %v1153 = vpop.f32.mrb[0].mxu0
    %v1154 = vpop.f32.mrb[0].mxu0
    %v1155 = vadd.f32 %v1027, %v1154
    %v1156 = vpop.f32.mrb[0].mxu0
    %1157 = vmatprep.mubr.bf16.mxu0 0
    %1158 = vmatmul.mubr.bf16.gmra.mrb[0].mxu0 %v994
    %v1159 = vpop.f32.mrb[0].mxu0
    %v1160 = vadd.f32 %v1027, %v1159
    %v1161 = vpop.f32.mrb[0].mxu0
    %v1162 = vpop.f32.mrb[0].mxu0
    %v1163 = vadd.f32 %v1027, %v1162
    %v1164 = vpop.f32.mrb[0].mxu0
    %1165 = vmatprep.mubr.bf16.mxu0 0
    %1166 = vmatmul.mubr.bf16.gmra.mrb[0].mxu0 %v995
    %v1167 = vpop.f32.mrb[0].mxu0
    %v1168 = vadd.f32 %v1027, %v1167
    %v1169 = vpop.f32.mrb[0].mxu0
    %v1170 = vpop.f32.mrb[0].mxu0
    %v1171 = vadd.f32 %v1027, %v1170
    %v1172 = vpop.f32.mrb[0].mxu0
    %1173 = vmatprep.mubr.bf16.mxu0 0
    %1174 = vmatmul.mubr.bf16.gmra.mrb[0].mxu0 %v996
    %v1175 = vpop.f32.mrb[0].mxu0
    %v1176 = vadd.f32 %v1027, %v1175
    %v1177 = vpop.f32.mrb[0].mxu0
    %v1178 = vpop.f32.mrb[0].mxu0
    %v1179 = vadd.f32 %v1027, %v1178
    %v1180 = vpop.f32.mrb[0].mxu0
    %1181 = vmatprep.mubr.bf16.mxu0 0
    %1182 = vmatmul.mubr.bf16.gmra.mrb[0].mxu0 %v997
    %v1183 = vpop.f32.mrb[0].mxu0
    %v1184 = vadd.f32 %v1027, %v1183
    %v1185 = vpop.f32.mrb[0].mxu0
    %v1186 = vpop.f32.mrb[0].mxu0
    %v1187 = vadd.f32 %v1027, %v1186
    %v1188 = vpop.f32.mrb[0].mxu0
    %1189 = vmatprep.mubr.bf16.mxu0 0
    %1190 = vmatmul.mubr.bf16.gmra.mrb[0].mxu0 %v998
    %v1191 = vpop.f32.mrb[0].mxu0
    %v1192 = vadd.f32 %v1027, %v1191
    %v1193 = vpop.f32.mrb[0].mxu0
    %v1194 = vpop.f32.mrb[0].mxu0
    %v1195 = vadd.f32 %v1027, %v1194
    %v1196 = vpop.f32.mrb[0].mxu0
    %1197 = vmatprep.mubr.bf16.mxu0 0
    %1198 = vmatmul.mubr.bf16.gmra.mrb[0].mxu0 %v999
    %v1199 = vpop.f32.mrb[0].mxu0
    %v1200 = vadd.f32 %v1027, %v1199
    %v1201 = vpop.f32.mrb[0].mxu0
    %v1202 = vpop.f32.mrb[0].mxu0
    %v1203 = vadd.f32 %v1027, %v1202
    %v1204 = vpop.f32.mrb[0].mxu0
    %1205 = vmatprep.mubr.bf16.mxu0 0
    %1206 = vmatmul.mubr.bf16.gmra.mrb[0].mxu0 %v1000
    %v1207 = vpop.f32.mrb[0].mxu0
    %v1208 = vadd.f32 %v1027, %v1207
    %v1209 = vpop.f32.mrb[0].mxu0
    %v1210 = vpop.f32.mrb[0].mxu0
    %v1211 = vadd.f32 %v1027, %v1210
    %v1212 = vpop.f32.mrb[0].mxu0
    %1213 = vmatprep.mubr.bf16.mxu0 0
    %1214 = vmatmul.mubr.bf16.gmra.mrb[0].mxu0 %v1001
    %v1215 = vpop.f32.mrb[0].mxu0
    %v1216 = vadd.f32 %v1027, %v1215
    %v1217 = vpop.f32.mrb[0].mxu0
    %v1218 = vpop.f32.mrb[0].mxu0
    %v1219 = vadd.f32 %v1027, %v1218
    %v1220 = vpop.f32.mrb[0].mxu0
    %1221 = vmatprep.mubr.bf16.mxu0 0
    %1222 = vmatmul.mubr.bf16.gmra.mrb[0].mxu0 %v1002
    %v1223 = vpop.f32.mrb[0].mxu0
    %v1224 = vadd.f32 %v1027, %v1223
    %v1225 = vpop.f32.mrb[0].mxu0
    %v1226 = vpop.f32.mrb[0].mxu0
    %v1227 = vadd.f32 %v1027, %v1226
    %v1228 = vpop.f32.mrb[0].mxu0
    %1229 = vmatprep.mubr.bf16.mxu0 0
    %1230 = vmatmul.mubr.bf16.gmra.mrb[0].mxu0 %v1003
    %v1231 = vpop.f32.mrb[0].mxu0
    %v1232 = vadd.f32 %v1027, %v1231
    %v1233 = vpop.f32.mrb[0].mxu0
    %v1234 = vpop.f32.mrb[0].mxu0
    %v1235 = vadd.f32 %v1027, %v1234
    %v1236 = vpop.f32.mrb[0].mxu0
    %1237 = vdwg.mxu0
    %v1238 = vmax.f32 %v1112, 0.0
    %v1239 = vmax.f32 %v1115, 0.0
    %v1240 = vmax.f32 %v1120, 0.0
    %v1241 = vmax.f32 %v1123, 0.0
    %v1242 = vmax.f32 %v1128, 0.0
    %v1243 = vmax.f32 %v1131, 0.0
    %v1244 = vmax.f32 %v1136, 0.0
    %v1245 = vmax.f32 %v1139, 0.0
    %v1246 = vmax.f32 %v1144, 0.0
    %v1247 = vmax.f32 %v1147, 0.0
    %v1248 = vmax.f32 %v1152, 0.0
    %v1249 = vmax.f32 %v1155, 0.0
    %v1250 = vmax.f32 %v1160, 0.0
    %v1251 = vmax.f32 %v1163, 0.0
    %v1252 = vmax.f32 %v1168, 0.0
    %v1253 = vmax.f32 %v1171, 0.0
    %v1254 = vmax.f32 %v1176, 0.0
    %v1255 = vmax.f32 %v1179, 0.0
    %v1256 = vmax.f32 %v1184, 0.0
    %v1257 = vmax.f32 %v1187, 0.0
    %v1258 = vmax.f32 %v1192, 0.0
    %v1259 = vmax.f32 %v1195, 0.0
    %v1260 = vmax.f32 %v1200, 0.0
    %v1261 = vmax.f32 %v1203, 0.0
    %v1262 = vmax.f32 %v1208, 0.0
    %v1263 = vmax.f32 %v1211, 0.0
    %v1264 = vmax.f32 %v1216, 0.0
    %v1265 = vmax.f32 %v1219, 0.0
    %v1266 = vmax.f32 %v1224, 0.0
    %v1267 = vmax.f32 %v1227, 0.0
    %v1268 = vmax.f32 %v1232, 0.0
    %v1269 = vmax.f32 %v1235, 0.0
    %v1270 = vpack.c.bf16 %v1239, %v1238
    %v1271 = vpack.c.bf16 %v1241, %v1240
    %v1272 = vpack.c.bf16 %v1243, %v1242
    %v1273 = vpack.c.bf16 %v1245, %v1244
    %v1274 = vpack.c.bf16 %v1247, %v1246
    %v1275 = vpack.c.bf16 %v1249, %v1248
    %v1276 = vpack.c.bf16 %v1251, %v1250
    %v1277 = vpack.c.bf16 %v1253, %v1252
    %v1278 = vpack.c.bf16 %v1255, %v1254
    %v1279 = vpack.c.bf16 %v1257, %v1256
    %v1280 = vpack.c.bf16 %v1259, %v1258
    %v1281 = vpack.c.bf16 %v1261, %v1260
    %v1282 = vpack.c.bf16 %v1263, %v1262
    %v1283 = vpack.c.bf16 %v1265, %v1264
    %v1284 = vpack.c.bf16 %v1267, %v1266
    %v1285 = vpack.c.bf16 %v1269, %v1268
    %s1286 = scalar_lea.vmem [#allocation2], 192
    %v1287 = vld [vmem:[%s1286] sm:$0xf]
    %v1288 = vld [vmem:[%s1286 + $0x4] sm:$0xf]
    %v1289 = vld [vmem:[%s1286 + $0x8] sm:$0xf]
    %v1290 = vld [vmem:[%s1286 + $0xc] sm:$0xf]
    %v1291 = vld [vmem:[%s1286 + $0x10] sm:$0xf]
    %v1292 = vld [vmem:[%s1286 + $0x14] sm:$0xf]
    %v1293 = vld [vmem:[%s1286 + $0x18] sm:$0xf]
    %v1294 = vld [vmem:[%s1286 + $0x1c] sm:$0xf]
    %v1295 = vld [vmem:[%s1286 + $0x20] sm:$0xf]
    %v1296 = vld [vmem:[%s1286 + $0x24] sm:$0xf]
    %v1297 = vld [vmem:[%s1286 + $0x28] sm:$0xf]
    %v1298 = vld [vmem:[%s1286 + $0x2c] sm:$0xf]
    %v1299 = vld [vmem:[%s1286 + $0x30] sm:$0xf]
    %v1300 = vld [vmem:[%s1286 + $0x34] sm:$0xf]
    %v1301 = vld [vmem:[%s1286 + $0x38] sm:$0xf]
    %v1302 = vld [vmem:[%s1286 + $0x3c] sm:$0xf]
    %s1303 = scalar_lea.vmem %s3, 4
    %v1304 = vld [vmem:[%s1303] sm:$0x1]
    %v1306 = vlaneseq
    %v1307 = vshrl.u32 %v1306, 7
    %v1308 = vsub.s32 0, %v1307
    %v1309 = vrot.slane %v1304, %v1308
    %v1327 = vunpack.c.l.b16 %v1287
    %v1328 = vunpack.c.l.b16 %v1288
    %v1329 = vunpack.c.l.b16 %v1289
    %v1330 = vunpack.c.l.b16 %v1290
    %v1331 = vunpack.c.l.b16 %v1291
    %v1332 = vunpack.c.l.b16 %v1292
    %v1333 = vunpack.c.l.b16 %v1293
    %v1334 = vunpack.c.l.b16 %v1294
    %v1335 = vunpack.c.l.b16 %v1295
    %v1336 = vunpack.c.l.b16 %v1296
    %v1337 = vunpack.c.l.b16 %v1297
    %v1338 = vunpack.c.l.b16 %v1298
    %v1339 = vunpack.c.l.b16 %v1299
    %v1340 = vunpack.c.l.b16 %v1300
    %v1341 = vunpack.c.l.b16 %v1301
    %v1342 = vunpack.c.l.b16 %v1302
    %v1343 = vpack.c.b16 %v1328, %v1327
    %v1344 = vpack.c.b16 %v1330, %v1329
    %v1345 = vpack.c.b16 %v1332, %v1331
    %v1346 = vpack.c.b16 %v1334, %v1333
    %v1347 = vpack.c.b16 %v1336, %v1335
    %v1348 = vpack.c.b16 %v1338, %v1337
    %v1349 = vpack.c.b16 %v1340, %v1339
    %v1350 = vpack.c.b16 %v1342, %v1341
    %1359 = vmatprep.subr.bf16.mxu0 0
    %1360 = vmatpush1.bf16.msra.mxu0 %v1343
    %1361 = vmatprep.subr.bf16.mxu0 0
    %1362 = vmatpush1.bf16.msra.mxu0 %v1344
    %1363 = vmatprep.subr.bf16.mxu0 0
    %1364 = vmatpush1.bf16.msra.mxu0 %v1345
    %1365 = vmatprep.subr.bf16.mxu0 0
    %1366 = vmatpush1.bf16.msra.mxu0 %v1346
    %1367 = vmatprep.subr.bf16.mxu0 0
    %1368 = vmatpush1.bf16.msra.mxu0 %v1347
    %1369 = vmatprep.subr.bf16.mxu0 0
    %1370 = vmatpush1.bf16.msra.mxu0 %v1348
    %1371 = vmatprep.subr.bf16.mxu0 0
    %1372 = vmatpush1.bf16.msra.mxu0 %v1349
    %1373 = vmatprep.subr.bf16.mxu0 0
    %1374 = vmatpush1.bf16.msra.mxu0 %v1350
    %1375 = vmatprep.subr.bf16.mxu0 0
    %1376 = vmatpush1.bf16.msra.mxu0 0
    %1377 = vmatprep.subr.bf16.mxu0 0
    %1378 = vmatpush1.bf16.msra.mxu0 0
    %1379 = vmatprep.subr.bf16.mxu0 0
    %1380 = vmatpush1.bf16.msra.mxu0 0
    %1381 = vmatprep.subr.bf16.mxu0 0
    %1382 = vmatpush1.bf16.msra.mxu0 0
    %1383 = vmatprep.subr.bf16.mxu0 0
    %1384 = vmatpush1.bf16.msra.mxu0 0
    %1385 = vmatprep.subr.bf16.mxu0 0
    %1386 = vmatpush1.bf16.msra.mxu0 0
    %1387 = vmatprep.subr.bf16.mxu0 0
    %1388 = vmatpush1.bf16.msra.mxu0 0
    %1389 = vmatprep.subr.bf16.mxu0 0
    %1390 = vmatpush1.bf16.msra.mxu0 0
    %1391 = vmatprep.mubr.bf16.mxu0 0
    %1392 = vmatmul.mubr.bf16.gmra.mrb[0].mxu0 %v1270
    %v1393 = vpop.f32.mrb[0].mxu0
    %v1394 = vadd.f32 %v1309, %v1393
    %v1395 = vpop.f32.mrb[0].mxu0
    %v1396 = vpop.f32.mrb[0].mxu0
    %v1397 = vadd.f32 %v1309, %v1396
    %v1398 = vpop.f32.mrb[0].mxu0
    %1399 = vmatprep.mubr.bf16.mxu0 0
    %1400 = vmatmul.mubr.bf16.gmra.mrb[0].mxu0 %v1271
    %v1401 = vpop.f32.mrb[0].mxu0
    %v1402 = vadd.f32 %v1309, %v1401
    %v1403 = vpop.f32.mrb[0].mxu0
    %v1404 = vpop.f32.mrb[0].mxu0
    %v1405 = vadd.f32 %v1309, %v1404
    %v1406 = vpop.f32.mrb[0].mxu0
    %1407 = vmatprep.mubr.bf16.mxu0 0
    %1408 = vmatmul.mubr.bf16.gmra.mrb[0].mxu0 %v1272
    %v1409 = vpop.f32.mrb[0].mxu0
    %v1410 = vadd.f32 %v1309, %v1409
    %v1411 = vpop.f32.mrb[0].mxu0
    %v1412 = vpop.f32.mrb[0].mxu0
    %v1413 = vadd.f32 %v1309, %v1412
    %v1414 = vpop.f32.mrb[0].mxu0
    %1415 = vmatprep.mubr.bf16.mxu0 0
    %1416 = vmatmul.mubr.bf16.gmra.mrb[0].mxu0 %v1273
    %v1417 = vpop.f32.mrb[0].mxu0
    %v1418 = vadd.f32 %v1309, %v1417
    %v1419 = vpop.f32.mrb[0].mxu0
    %v1420 = vpop.f32.mrb[0].mxu0
    %v1421 = vadd.f32 %v1309, %v1420
    %v1422 = vpop.f32.mrb[0].mxu0
    %1423 = vmatprep.mubr.bf16.mxu0 0
    %1424 = vmatmul.mubr.bf16.gmra.mrb[0].mxu0 %v1274
    %v1425 = vpop.f32.mrb[0].mxu0
    %v1426 = vadd.f32 %v1309, %v1425
    %v1427 = vpop.f32.mrb[0].mxu0
    %v1428 = vpop.f32.mrb[0].mxu0
    %v1429 = vadd.f32 %v1309, %v1428
    %v1430 = vpop.f32.mrb[0].mxu0
    %1431 = vmatprep.mubr.bf16.mxu0 0
    %1432 = vmatmul.mubr.bf16.gmra.mrb[0].mxu0 %v1275
    %v1433 = vpop.f32.mrb[0].mxu0
    %v1434 = vadd.f32 %v1309, %v1433
    %v1435 = vpop.f32.mrb[0].mxu0
    %v1436 = vpop.f32.mrb[0].mxu0
    %v1437 = vadd.f32 %v1309, %v1436
    %v1438 = vpop.f32.mrb[0].mxu0
    %1439 = vmatprep.mubr.bf16.mxu0 0
    %1440 = vmatmul.mubr.bf16.gmra.mrb[0].mxu0 %v1276
    %v1441 = vpop.f32.mrb[0].mxu0
    %v1442 = vadd.f32 %v1309, %v1441
    %v1443 = vpop.f32.mrb[0].mxu0
    %v1444 = vpop.f32.mrb[0].mxu0
    %v1445 = vadd.f32 %v1309, %v1444
    %v1446 = vpop.f32.mrb[0].mxu0
    %1447 = vmatprep.mubr.bf16.mxu0 0
    %1448 = vmatmul.mubr.bf16.gmra.mrb[0].mxu0 %v1277
    %v1449 = vpop.f32.mrb[0].mxu0
    %v1450 = vadd.f32 %v1309, %v1449
    %v1451 = vpop.f32.mrb[0].mxu0
    %v1452 = vpop.f32.mrb[0].mxu0
    %v1453 = vadd.f32 %v1309, %v1452
    %v1454 = vpop.f32.mrb[0].mxu0
    %1455 = vmatprep.mubr.bf16.mxu0 0
    %1456 = vmatmul.mubr.bf16.gmra.mrb[0].mxu0 %v1278
    %v1457 = vpop.f32.mrb[0].mxu0
    %v1458 = vadd.f32 %v1309, %v1457
    %v1459 = vpop.f32.mrb[0].mxu0
    %v1460 = vpop.f32.mrb[0].mxu0
    %v1461 = vadd.f32 %v1309, %v1460
    %v1462 = vpop.f32.mrb[0].mxu0
    %1463 = vmatprep.mubr.bf16.mxu0 0
    %1464 = vmatmul.mubr.bf16.gmra.mrb[0].mxu0 %v1279
    %v1465 = vpop.f32.mrb[0].mxu0
    %v1466 = vadd.f32 %v1309, %v1465
    %v1467 = vpop.f32.mrb[0].mxu0
    %v1468 = vpop.f32.mrb[0].mxu0
    %v1469 = vadd.f32 %v1309, %v1468
    %v1470 = vpop.f32.mrb[0].mxu0
    %1471 = vmatprep.mubr.bf16.mxu0 0
    %1472 = vmatmul.mubr.bf16.gmra.mrb[0].mxu0 %v1280
    %v1473 = vpop.f32.mrb[0].mxu0
    %v1474 = vadd.f32 %v1309, %v1473
    %v1475 = vpop.f32.mrb[0].mxu0
    %v1476 = vpop.f32.mrb[0].mxu0
    %v1477 = vadd.f32 %v1309, %v1476
    %v1478 = vpop.f32.mrb[0].mxu0
    %1479 = vmatprep.mubr.bf16.mxu0 0
    %1480 = vmatmul.mubr.bf16.gmra.mrb[0].mxu0 %v1281
    %v1481 = vpop.f32.mrb[0].mxu0
    %v1482 = vadd.f32 %v1309, %v1481
    %v1483 = vpop.f32.mrb[0].mxu0
    %v1484 = vpop.f32.mrb[0].mxu0
    %v1485 = vadd.f32 %v1309, %v1484
    %v1486 = vpop.f32.mrb[0].mxu0
    %1487 = vmatprep.mubr.bf16.mxu0 0
    %1488 = vmatmul.mubr.bf16.gmra.mrb[0].mxu0 %v1282
    %v1489 = vpop.f32.mrb[0].mxu0
    %v1490 = vadd.f32 %v1309, %v1489
    %v1491 = vpop.f32.mrb[0].mxu0
    %v1492 = vpop.f32.mrb[0].mxu0
    %v1493 = vadd.f32 %v1309, %v1492
    %v1494 = vpop.f32.mrb[0].mxu0
    %1495 = vmatprep.mubr.bf16.mxu0 0
    %1496 = vmatmul.mubr.bf16.gmra.mrb[0].mxu0 %v1283
    %v1497 = vpop.f32.mrb[0].mxu0
    %v1498 = vadd.f32 %v1309, %v1497
    %v1499 = vpop.f32.mrb[0].mxu0
    %v1500 = vpop.f32.mrb[0].mxu0
    %v1501 = vadd.f32 %v1309, %v1500
    %v1502 = vpop.f32.mrb[0].mxu0
    %1503 = vmatprep.mubr.bf16.mxu0 0
    %1504 = vmatmul.mubr.bf16.gmra.mrb[0].mxu0 %v1284
    %v1505 = vpop.f32.mrb[0].mxu0
    %v1506 = vadd.f32 %v1309, %v1505
    %v1507 = vpop.f32.mrb[0].mxu0
    %v1508 = vpop.f32.mrb[0].mxu0
    %v1509 = vadd.f32 %v1309, %v1508
    %v1510 = vpop.f32.mrb[0].mxu0
    %1511 = vmatprep.mubr.bf16.mxu0 0
    %1512 = vmatmul.mubr.bf16.gmra.mrb[0].mxu0 %v1285
    %v1513 = vpop.f32.mrb[0].mxu0
    %v1514 = vadd.f32 %v1309, %v1513
    %v1515 = vpop.f32.mrb[0].mxu0
    %v1516 = vpop.f32.mrb[0].mxu0
    %v1517 = vadd.f32 %v1309, %v1516
    %v1518 = vpop.f32.mrb[0].mxu0
    %1519 = vdwg.mxu0
    %v1520 = vmax.f32 %v1394, 0.0
    %v1521 = vmax.f32 %v1397, 0.0
    %v1522 = vmax.f32 %v1402, 0.0
    %v1523 = vmax.f32 %v1405, 0.0
    %v1524 = vmax.f32 %v1410, 0.0
    %v1525 = vmax.f32 %v1413, 0.0
    %v1526 = vmax.f32 %v1418, 0.0
    %v1527 = vmax.f32 %v1421, 0.0
    %v1528 = vmax.f32 %v1426, 0.0
    %v1529 = vmax.f32 %v1429, 0.0
    %v1530 = vmax.f32 %v1434, 0.0
    %v1531 = vmax.f32 %v1437, 0.0
    %v1532 = vmax.f32 %v1442, 0.0
    %v1533 = vmax.f32 %v1445, 0.0
    %v1534 = vmax.f32 %v1450, 0.0
    %v1535 = vmax.f32 %v1453, 0.0
    %v1536 = vmax.f32 %v1458, 0.0
    %v1537 = vmax.f32 %v1461, 0.0
    %v1538 = vmax.f32 %v1466, 0.0
    %v1539 = vmax.f32 %v1469, 0.0
    %v1540 = vmax.f32 %v1474, 0.0
    %v1541 = vmax.f32 %v1477, 0.0
    %v1542 = vmax.f32 %v1482, 0.0
    %v1543 = vmax.f32 %v1485, 0.0
    %v1544 = vmax.f32 %v1490, 0.0
    %v1545 = vmax.f32 %v1493, 0.0
    %v1546 = vmax.f32 %v1498, 0.0
    %v1547 = vmax.f32 %v1501, 0.0
    %v1548 = vmax.f32 %v1506, 0.0
    %v1549 = vmax.f32 %v1509, 0.0
    %v1550 = vmax.f32 %v1514, 0.0
    %v1551 = vmax.f32 %v1517, 0.0
    %v1552 = vpack.c.bf16 %v1521, %v1520
    %v1553 = vpack.c.bf16 %v1523, %v1522
    %v1554 = vpack.c.bf16 %v1525, %v1524
    %v1555 = vpack.c.bf16 %v1527, %v1526
    %v1556 = vpack.c.bf16 %v1529, %v1528
    %v1557 = vpack.c.bf16 %v1531, %v1530
    %v1558 = vpack.c.bf16 %v1533, %v1532
    %v1559 = vpack.c.bf16 %v1535, %v1534
    %v1560 = vpack.c.bf16 %v1537, %v1536
    %v1561 = vpack.c.bf16 %v1539, %v1538
    %v1562 = vpack.c.bf16 %v1541, %v1540
    %v1563 = vpack.c.bf16 %v1543, %v1542
    %v1564 = vpack.c.bf16 %v1545, %v1544
    %v1565 = vpack.c.bf16 %v1547, %v1546
    %v1566 = vpack.c.bf16 %v1549, %v1548
    %v1567 = vpack.c.bf16 %v1551, %v1550
    %s1568 = scalar_lea.vmem [#allocation2], 256
    %v1569 = vld [vmem:[%s1568] sm:$0xf]
    %v1570 = vld [vmem:[%s1568 + $0x4] sm:$0xf]
    %v1571 = vld [vmem:[%s1568 + $0x8] sm:$0xf]
    %v1572 = vld [vmem:[%s1568 + $0xc] sm:$0xf]
    %v1573 = vld [vmem:[%s1568 + $0x10] sm:$0xf]
    %v1574 = vld [vmem:[%s1568 + $0x14] sm:$0xf]
    %v1575 = vld [vmem:[%s1568 + $0x18] sm:$0xf]
    %v1576 = vld [vmem:[%s1568 + $0x1c] sm:$0xf]
    %v1577 = vld [vmem:[%s1568 + $0x20] sm:$0xf]
    %v1578 = vld [vmem:[%s1568 + $0x24] sm:$0xf]
    %v1579 = vld [vmem:[%s1568 + $0x28] sm:$0xf]
    %v1580 = vld [vmem:[%s1568 + $0x2c] sm:$0xf]
    %v1581 = vld [vmem:[%s1568 + $0x30] sm:$0xf]
    %v1582 = vld [vmem:[%s1568 + $0x34] sm:$0xf]
    %v1583 = vld [vmem:[%s1568 + $0x38] sm:$0xf]
    %v1584 = vld [vmem:[%s1568 + $0x3c] sm:$0xf]
    %s1585 = scalar_lea.vmem %s3, 5
    %v1586 = vld [vmem:[%s1585] sm:$0x1]
    %v1588 = vlaneseq
    %v1589 = vshrl.u32 %v1588, 7
    %v1590 = vsub.s32 0, %v1589
    %v1591 = vrot.slane %v1586, %v1590
    %v1609 = vunpack.c.l.b16 %v1569
    %v1610 = vunpack.c.l.b16 %v1570
    %v1611 = vunpack.c.l.b16 %v1571
    %v1612 = vunpack.c.l.b16 %v1572
    %v1613 = vunpack.c.l.b16 %v1573
    %v1614 = vunpack.c.l.b16 %v1574
    %v1615 = vunpack.c.l.b16 %v1575
    %v1616 = vunpack.c.l.b16 %v1576
    %v1617 = vunpack.c.l.b16 %v1577
    %v1618 = vunpack.c.l.b16 %v1578
    %v1619 = vunpack.c.l.b16 %v1579
    %v1620 = vunpack.c.l.b16 %v1580
    %v1621 = vunpack.c.l.b16 %v1581
    %v1622 = vunpack.c.l.b16 %v1582
    %v1623 = vunpack.c.l.b16 %v1583
    %v1624 = vunpack.c.l.b16 %v1584
    %v1625 = vpack.c.b16 %v1610, %v1609
    %v1626 = vpack.c.b16 %v1612, %v1611
    %v1627 = vpack.c.b16 %v1614, %v1613
    %v1628 = vpack.c.b16 %v1616, %v1615
    %v1629 = vpack.c.b16 %v1618, %v1617
    %v1630 = vpack.c.b16 %v1620, %v1619
    %v1631 = vpack.c.b16 %v1622, %v1621
    %v1632 = vpack.c.b16 %v1624, %v1623
    %1641 = vmatprep.subr.bf16.mxu0 0
    %1642 = vmatpush1.bf16.msra.mxu0 %v1625
    %1643 = vmatprep.subr.bf16.mxu0 0
    %1644 = vmatpush1.bf16.msra.mxu0 %v1626
    %1645 = vmatprep.subr.bf16.mxu0 0
    %1646 = vmatpush1.bf16.msra.mxu0 %v1627
    %1647 = vmatprep.subr.bf16.mxu0 0
    %1648 = vmatpush1.bf16.msra.mxu0 %v1628
    %1649 = vmatprep.subr.bf16.mxu0 0
    %1650 = vmatpush1.bf16.msra.mxu0 %v1629
    %1651 = vmatprep.subr.bf16.mxu0 0
    %1652 = vmatpush1.bf16.msra.mxu0 %v1630
    %1653 = vmatprep.subr.bf16.mxu0 0
    %1654 = vmatpush1.bf16.msra.mxu0 %v1631
    %1655 = vmatprep.subr.bf16.mxu0 0
    %1656 = vmatpush1.bf16.msra.mxu0 %v1632
    %1657 = vmatprep.subr.bf16.mxu0 0
    %1658 = vmatpush1.bf16.msra.mxu0 0
    %1659 = vmatprep.subr.bf16.mxu0 0
    %1660 = vmatpush1.bf16.msra.mxu0 0
    %1661 = vmatprep.subr.bf16.mxu0 0
    %1662 = vmatpush1.bf16.msra.mxu0 0
    %1663 = vmatprep.subr.bf16.mxu0 0
    %1664 = vmatpush1.bf16.msra.mxu0 0
    %1665 = vmatprep.subr.bf16.mxu0 0
    %1666 = vmatpush1.bf16.msra.mxu0 0
    %1667 = vmatprep.subr.bf16.mxu0 0
    %1668 = vmatpush1.bf16.msra.mxu0 0
    %1669 = vmatprep.subr.bf16.mxu0 0
    %1670 = vmatpush1.bf16.msra.mxu0 0
    %1671 = vmatprep.subr.bf16.mxu0 0
    %1672 = vmatpush1.bf16.msra.mxu0 0
    %1673 = vmatprep.mubr.bf16.mxu0 0
    %1674 = vmatmul.mubr.bf16.gmra.mrb[0].mxu0 %v1552
    %v1675 = vpop.f32.mrb[0].mxu0
    %v1676 = vadd.f32 %v1591, %v1675
    %v1677 = vpop.f32.mrb[0].mxu0
    %v1678 = vpop.f32.mrb[0].mxu0
    %v1679 = vadd.f32 %v1591, %v1678
    %v1680 = vpop.f32.mrb[0].mxu0
    %1681 = vmatprep.mubr.bf16.mxu0 0
    %1682 = vmatmul.mubr.bf16.gmra.mrb[0].mxu0 %v1553
    %v1683 = vpop.f32.mrb[0].mxu0
    %v1684 = vadd.f32 %v1591, %v1683
    %v1685 = vpop.f32.mrb[0].mxu0
    %v1686 = vpop.f32.mrb[0].mxu0
    %v1687 = vadd.f32 %v1591, %v1686
    %v1688 = vpop.f32.mrb[0].mxu0
    %1689 = vmatprep.mubr.bf16.mxu0 0
    %1690 = vmatmul.mubr.bf16.gmra.mrb[0].mxu0 %v1554
    %v1691 = vpop.f32.mrb[0].mxu0
    %v1692 = vadd.f32 %v1591, %v1691
    %v1693 = vpop.f32.mrb[0].mxu0
    %v1694 = vpop.f32.mrb[0].mxu0
    %v1695 = vadd.f32 %v1591, %v1694
    %v1696 = vpop.f32.mrb[0].mxu0
    %1697 = vmatprep.mubr.bf16.mxu0 0
    %1698 = vmatmul.mubr.bf16.gmra.mrb[0].mxu0 %v1555
    %v1699 = vpop.f32.mrb[0].mxu0
    %v1700 = vadd.f32 %v1591, %v1699
    %v1701 = vpop.f32.mrb[0].mxu0
    %v1702 = vpop.f32.mrb[0].mxu0
    %v1703 = vadd.f32 %v1591, %v1702
    %v1704 = vpop.f32.mrb[0].mxu0
    %1705 = vmatprep.mubr.bf16.mxu0 0
    %1706 = vmatmul.mubr.bf16.gmra.mrb[0].mxu0 %v1556
    %v1707 = vpop.f32.mrb[0].mxu0
    %v1708 = vadd.f32 %v1591, %v1707
    %v1709 = vpop.f32.mrb[0].mxu0
    %v1710 = vpop.f32.mrb[0].mxu0
    %v1711 = vadd.f32 %v1591, %v1710
    %v1712 = vpop.f32.mrb[0].mxu0
    %1713 = vmatprep.mubr.bf16.mxu0 0
    %1714 = vmatmul.mubr.bf16.gmra.mrb[0].mxu0 %v1557
    %v1715 = vpop.f32.mrb[0].mxu0
    %v1716 = vadd.f32 %v1591, %v1715
    %v1717 = vpop.f32.mrb[0].mxu0
    %v1718 = vpop.f32.mrb[0].mxu0
    %v1719 = vadd.f32 %v1591, %v1718
    %v1720 = vpop.f32.mrb[0].mxu0
    %1721 = vmatprep.mubr.bf16.mxu0 0
    %1722 = vmatmul.mubr.bf16.gmra.mrb[0].mxu0 %v1558
    %v1723 = vpop.f32.mrb[0].mxu0
    %v1724 = vadd.f32 %v1591, %v1723
    %v1725 = vpop.f32.mrb[0].mxu0
    %v1726 = vpop.f32.mrb[0].mxu0
    %v1727 = vadd.f32 %v1591, %v1726
    %v1728 = vpop.f32.mrb[0].mxu0
    %1729 = vmatprep.mubr.bf16.mxu0 0
    %1730 = vmatmul.mubr.bf16.gmra.mrb[0].mxu0 %v1559
    %v1731 = vpop.f32.mrb[0].mxu0
    %v1732 = vadd.f32 %v1591, %v1731
    %v1733 = vpop.f32.mrb[0].mxu0
    %v1734 = vpop.f32.mrb[0].mxu0
    %v1735 = vadd.f32 %v1591, %v1734
    %v1736 = vpop.f32.mrb[0].mxu0
    %1737 = vmatprep.mubr.bf16.mxu0 0
    %1738 = vmatmul.mubr.bf16.gmra.mrb[0].mxu0 %v1560
    %v1739 = vpop.f32.mrb[0].mxu0
    %v1740 = vadd.f32 %v1591, %v1739
    %v1741 = vpop.f32.mrb[0].mxu0
    %v1742 = vpop.f32.mrb[0].mxu0
    %v1743 = vadd.f32 %v1591, %v1742
    %v1744 = vpop.f32.mrb[0].mxu0
    %1745 = vmatprep.mubr.bf16.mxu0 0
    %1746 = vmatmul.mubr.bf16.gmra.mrb[0].mxu0 %v1561
    %v1747 = vpop.f32.mrb[0].mxu0
    %v1748 = vadd.f32 %v1591, %v1747
    %v1749 = vpop.f32.mrb[0].mxu0
    %v1750 = vpop.f32.mrb[0].mxu0
    %v1751 = vadd.f32 %v1591, %v1750
    %v1752 = vpop.f32.mrb[0].mxu0
    %1753 = vmatprep.mubr.bf16.mxu0 0
    %1754 = vmatmul.mubr.bf16.gmra.mrb[0].mxu0 %v1562
    %v1755 = vpop.f32.mrb[0].mxu0
    %v1756 = vadd.f32 %v1591, %v1755
    %v1757 = vpop.f32.mrb[0].mxu0
    %v1758 = vpop.f32.mrb[0].mxu0
    %v1759 = vadd.f32 %v1591, %v1758
    %v1760 = vpop.f32.mrb[0].mxu0
    %1761 = vmatprep.mubr.bf16.mxu0 0
    %1762 = vmatmul.mubr.bf16.gmra.mrb[0].mxu0 %v1563
    %v1763 = vpop.f32.mrb[0].mxu0
    %v1764 = vadd.f32 %v1591, %v1763
    %v1765 = vpop.f32.mrb[0].mxu0
    %v1766 = vpop.f32.mrb[0].mxu0
    %v1767 = vadd.f32 %v1591, %v1766
    %v1768 = vpop.f32.mrb[0].mxu0
    %1769 = vmatprep.mubr.bf16.mxu0 0
    %1770 = vmatmul.mubr.bf16.gmra.mrb[0].mxu0 %v1564
    %v1771 = vpop.f32.mrb[0].mxu0
    %v1772 = vadd.f32 %v1591, %v1771
    %v1773 = vpop.f32.mrb[0].mxu0
    %v1774 = vpop.f32.mrb[0].mxu0
    %v1775 = vadd.f32 %v1591, %v1774
    %v1776 = vpop.f32.mrb[0].mxu0
    %1777 = vmatprep.mubr.bf16.mxu0 0
    %1778 = vmatmul.mubr.bf16.gmra.mrb[0].mxu0 %v1565
    %v1779 = vpop.f32.mrb[0].mxu0
    %v1780 = vadd.f32 %v1591, %v1779
    %v1781 = vpop.f32.mrb[0].mxu0
    %v1782 = vpop.f32.mrb[0].mxu0
    %v1783 = vadd.f32 %v1591, %v1782
    %v1784 = vpop.f32.mrb[0].mxu0
    %1785 = vmatprep.mubr.bf16.mxu0 0
    %1786 = vmatmul.mubr.bf16.gmra.mrb[0].mxu0 %v1566
    %v1787 = vpop.f32.mrb[0].mxu0
    %v1788 = vadd.f32 %v1591, %v1787
    %v1789 = vpop.f32.mrb[0].mxu0
    %v1790 = vpop.f32.mrb[0].mxu0
    %v1791 = vadd.f32 %v1591, %v1790
    %v1792 = vpop.f32.mrb[0].mxu0
    %1793 = vmatprep.mubr.bf16.mxu0 0
    %1794 = vmatmul.mubr.bf16.gmra.mrb[0].mxu0 %v1567
    %v1795 = vpop.f32.mrb[0].mxu0
    %v1796 = vadd.f32 %v1591, %v1795
    %v1797 = vpop.f32.mrb[0].mxu0
    %v1798 = vpop.f32.mrb[0].mxu0
    %v1799 = vadd.f32 %v1591, %v1798
    %v1800 = vpop.f32.mrb[0].mxu0
    %1801 = vdwg.mxu0
    %v1802 = vmax.f32 %v1676, 0.0
    %v1803 = vmax.f32 %v1679, 0.0
    %v1804 = vmax.f32 %v1684, 0.0
    %v1805 = vmax.f32 %v1687, 0.0
    %v1806 = vmax.f32 %v1692, 0.0
    %v1807 = vmax.f32 %v1695, 0.0
    %v1808 = vmax.f32 %v1700, 0.0
    %v1809 = vmax.f32 %v1703, 0.0
    %v1810 = vmax.f32 %v1708, 0.0
    %v1811 = vmax.f32 %v1711, 0.0
    %v1812 = vmax.f32 %v1716, 0.0
    %v1813 = vmax.f32 %v1719, 0.0
    %v1814 = vmax.f32 %v1724, 0.0
    %v1815 = vmax.f32 %v1727, 0.0
    %v1816 = vmax.f32 %v1732, 0.0
    %v1817 = vmax.f32 %v1735, 0.0
    %v1818 = vmax.f32 %v1740, 0.0
    %v1819 = vmax.f32 %v1743, 0.0
    %v1820 = vmax.f32 %v1748, 0.0
    %v1821 = vmax.f32 %v1751, 0.0
    %v1822 = vmax.f32 %v1756, 0.0
    %v1823 = vmax.f32 %v1759, 0.0
    %v1824 = vmax.f32 %v1764, 0.0
    %v1825 = vmax.f32 %v1767, 0.0
    %v1826 = vmax.f32 %v1772, 0.0
    %v1827 = vmax.f32 %v1775, 0.0
    %v1828 = vmax.f32 %v1780, 0.0
    %v1829 = vmax.f32 %v1783, 0.0
    %v1830 = vmax.f32 %v1788, 0.0
    %v1831 = vmax.f32 %v1791, 0.0
    %v1832 = vmax.f32 %v1796, 0.0
    %v1833 = vmax.f32 %v1799, 0.0
    %v1834 = vpack.c.bf16 %v1803, %v1802
    %v1835 = vpack.c.bf16 %v1805, %v1804
    %v1836 = vpack.c.bf16 %v1807, %v1806
    %v1837 = vpack.c.bf16 %v1809, %v1808
    %v1838 = vpack.c.bf16 %v1811, %v1810
    %v1839 = vpack.c.bf16 %v1813, %v1812
    %v1840 = vpack.c.bf16 %v1815, %v1814
    %v1841 = vpack.c.bf16 %v1817, %v1816
    %v1842 = vpack.c.bf16 %v1819, %v1818
    %v1843 = vpack.c.bf16 %v1821, %v1820
    %v1844 = vpack.c.bf16 %v1823, %v1822
    %v1845 = vpack.c.bf16 %v1825, %v1824
    %v1846 = vpack.c.bf16 %v1827, %v1826
    %v1847 = vpack.c.bf16 %v1829, %v1828
    %v1848 = vpack.c.bf16 %v1831, %v1830
    %v1849 = vpack.c.bf16 %v1833, %v1832
    %v1866 = vunpack.c.l.b16 %v1834
    %v1867 = vunpack.c.h.b16 %v1834
    %v1868 = vunpack.c.l.b16 %v1835
    %v1869 = vunpack.c.h.b16 %v1835
    %v1870 = vunpack.c.l.b16 %v1836
    %v1871 = vunpack.c.h.b16 %v1836
    %v1872 = vunpack.c.l.b16 %v1837
    %v1873 = vunpack.c.h.b16 %v1837
    %v1874 = vunpack.c.l.b16 %v1838
    %v1875 = vunpack.c.h.b16 %v1838
    %v1876 = vunpack.c.l.b16 %v1839
    %v1877 = vunpack.c.h.b16 %v1839
    %v1878 = vunpack.c.l.b16 %v1840
    %v1879 = vunpack.c.h.b16 %v1840
    %v1880 = vunpack.c.l.b16 %v1841
    %v1881 = vunpack.c.h.b16 %v1841
    %v1882 = vunpack.c.l.b16 %v1842
    %v1883 = vunpack.c.h.b16 %v1842
    %v1884 = vunpack.c.l.b16 %v1843
    %v1885 = vunpack.c.h.b16 %v1843
    %v1886 = vunpack.c.l.b16 %v1844
    %v1887 = vunpack.c.h.b16 %v1844
    %v1888 = vunpack.c.l.b16 %v1845
    %v1889 = vunpack.c.h.b16 %v1845
    %v1890 = vunpack.c.l.b16 %v1846
    %v1891 = vunpack.c.h.b16 %v1846
    %v1892 = vunpack.c.l.b16 %v1847
    %v1893 = vunpack.c.h.b16 %v1847
    %v1894 = vunpack.c.l.b16 %v1848
    %v1895 = vunpack.c.h.b16 %v1848
    %v1896 = vunpack.c.l.b16 %v1849
    %v1897 = vunpack.c.h.b16 %v1849
    %v1898 = vpack.c.b16 %v1866, %v1866
    %v1899 = vpack.c.b16 %v1867, %v1867
    %v1900 = vpack.c.b16 %v1868, %v1868
    %v1901 = vpack.c.b16 %v1869, %v1869
    %v1902 = vpack.c.b16 %v1870, %v1870
    %v1903 = vpack.c.b16 %v1871, %v1871
    %v1904 = vpack.c.b16 %v1872, %v1872
    %v1905 = vpack.c.b16 %v1873, %v1873
    %v1906 = vpack.c.b16 %v1874, %v1874
    %v1907 = vpack.c.b16 %v1875, %v1875
    %v1908 = vpack.c.b16 %v1876, %v1876
    %v1909 = vpack.c.b16 %v1877, %v1877
    %v1910 = vpack.c.b16 %v1878, %v1878
    %v1911 = vpack.c.b16 %v1879, %v1879
    %v1912 = vpack.c.b16 %v1880, %v1880
    %v1913 = vpack.c.b16 %v1881, %v1881
    %v1914 = vpack.c.b16 %v1882, %v1882
    %v1915 = vpack.c.b16 %v1883, %v1883
    %v1916 = vpack.c.b16 %v1884, %v1884
    %v1917 = vpack.c.b16 %v1885, %v1885
    %v1918 = vpack.c.b16 %v1886, %v1886
    %v1919 = vpack.c.b16 %v1887, %v1887
    %v1920 = vpack.c.b16 %v1888, %v1888
    %v1921 = vpack.c.b16 %v1889, %v1889
    %v1922 = vpack.c.b16 %v1890, %v1890
    %v1923 = vpack.c.b16 %v1891, %v1891
    %v1924 = vpack.c.b16 %v1892, %v1892
    %v1925 = vpack.c.b16 %v1893, %v1893
    %v1926 = vpack.c.b16 %v1894, %v1894
    %v1927 = vpack.c.b16 %v1895, %v1895
    %v1928 = vpack.c.b16 %v1896, %v1896
    %v1929 = vpack.c.b16 %v1897, %v1897
    %1962 = vst [vmem:[%s4] sm:$0xf] %v1898
    %1963 = vst [vmem:[%s4 + $0x4] sm:$0xf] %v1899
    %1964 = vst [vmem:[%s4 + $0x8] sm:$0xf] %v1900
    %1965 = vst [vmem:[%s4 + $0xc] sm:$0xf] %v1901
    %1966 = vst [vmem:[%s4 + $0x10] sm:$0xf] %v1902
    %1967 = vst [vmem:[%s4 + $0x14] sm:$0xf] %v1903
    %1968 = vst [vmem:[%s4 + $0x18] sm:$0xf] %v1904
    %1969 = vst [vmem:[%s4 + $0x1c] sm:$0xf] %v1905
    %1970 = vst [vmem:[%s4 + $0x20] sm:$0xf] %v1906
    %1971 = vst [vmem:[%s4 + $0x24] sm:$0xf] %v1907
    %1972 = vst [vmem:[%s4 + $0x28] sm:$0xf] %v1908
    %1973 = vst [vmem:[%s4 + $0x2c] sm:$0xf] %v1909
    %1974 = vst [vmem:[%s4 + $0x30] sm:$0xf] %v1910
    %1975 = vst [vmem:[%s4 + $0x34] sm:$0xf] %v1911
    %1976 = vst [vmem:[%s4 + $0x38] sm:$0xf] %v1912
    %1977 = vst [vmem:[%s4 + $0x3c] sm:$0xf] %v1913
    %1978 = vst [vmem:[%s4 + $0x40] sm:$0xf] %v1914
    %1979 = vst [vmem:[%s4 + $0x44] sm:$0xf] %v1915
    %1980 = vst [vmem:[%s4 + $0x48] sm:$0xf] %v1916
    %1981 = vst [vmem:[%s4 + $0x4c] sm:$0xf] %v1917
    %1982 = vst [vmem:[%s4 + $0x50] sm:$0xf] %v1918
    %1983 = vst [vmem:[%s4 + $0x54] sm:$0xf] %v1919
    %1984 = vst [vmem:[%s4 + $0x58] sm:$0xf] %v1920
    %1985 = vst [vmem:[%s4 + $0x5c] sm:$0xf] %v1921
    %1986 = vst [vmem:[%s4 + $0x60] sm:$0xf] %v1922
    %1987 = vst [vmem:[%s4 + $0x64] sm:$0xf] %v1923
    %1988 = vst [vmem:[%s4 + $0x68] sm:$0xf] %v1924
    %1989 = vst [vmem:[%s4 + $0x6c] sm:$0xf] %v1925
    %1990 = vst [vmem:[%s4 + $0x70] sm:$0xf] %v1926
    %1991 = vst [vmem:[%s4 + $0x74] sm:$0xf] %v1927
    %1992 = vst [vmem:[%s4 + $0x78] sm:$0xf] %v1928
    %1993 = vst [vmem:[%s4 + $0x7c] sm:$0xf] %v1929
    // Predicated region
    $region22: #{autoencoder_forward.1} parent=1 // pred_check
      _
    $region23: #{autoencoder_forward.1} parent=1 // pred_check_branch
      %1995 = sbr.rel (0) target = $region25
    $region24: #{autoencoder_forward.1} parent=1 // pred_region
      _
    $region25: #{autoencoder_forward.1} parent=1 // pred_fallthru
      _
    // Predicated region
    $region26: #{autoencoder_forward.1} parent=1 // pred_check
      _
    $region27: #{autoencoder_forward.1} parent=1 // pred_check_branch
      %1997 = sbr.rel (0) target = $region29
    $region28: #{autoencoder_forward.1} parent=1 // pred_region
      _
    $region29: #{autoencoder_forward.1} parent=1 // pred_fallthru
      _
    %1998 = vsyncpa [#allocation3], 1

</llo_original>
